<compile_context>
chip_gen: v6e
topology: v6e:2x2x1
jax: 0.10.0
libtpu: 0.0.40
codegen_flags: <defaults>
</compile_context>

<pallas_src>
import numpy as np
import jax
import jax.numpy as jnp
from jax.experimental import pallas as pl
from jax.experimental.pallas import tpu as pltpu


# ---------------------------------------------------------------------------
# helpers
# ---------------------------------------------------------------------------
def _round_up(v, m):
    return (v + m - 1) // m * m


def _size_kernel(hw_pad, ch, w_pad, h_pad, c_pad, batch, max_dst_tile=None):
    """Pick destination-panel width TQ and a vmem limit from per-step footprint."""
    try:
        vmem_cap = int(pltpu.get_tpu_info().vmem_capacity_bytes)
    except Exception:
        vmem_cap = 64 * 1024 * 1024          # conservative (v7x per-TC)
    budget = vmem_cap // 2                   # headroom for compiler scratch

    x_bytes = 2 * ch * w_pad * 4             # double-buffered feature block

    def footprint(tq):
        panels = (w_pad + h_pad) * tq * 4            # Sx + Sy
        temps = 2 * ch * tq * 4                      # T and weighted product
        iota = 2 * max(w_pad, h_pad) * tq * 4        # iota / compare temporaries
        io = 2 * (8 + c_pad) * tq * 4                # coord + out blocks (x2 bufs)
        return x_bytes + panels + temps + iota + io

    cands = [t for t in range(128, hw_pad + 1, 128) if hw_pad % t == 0]
    if max_dst_tile is not None:
        limited = [t for t in cands if t <= max_dst_tile]
        cands = limited or cands[:1]
    feasible = [t for t in cands if footprint(t) <= budget] or cands[:1]
    tq = feasible[-1]
    # v7x has 2 TensorCores: keep at least 2 parallel grid units (B * NQ >= 2).
    if batch * (hw_pad // tq) < 2:
        smaller = [t for t in feasible if hw_pad // t >= 2]
        if smaller:
            tq = smaller[-1]
    vmem_limit = int(min(int(0.75 * vmem_cap),
                         max(32 * 1024 * 1024, 2 * footprint(tq))))
    return tq, vmem_limit


# ---------------------------------------------------------------------------
# Pallas kernel
# ---------------------------------------------------------------------------
def _make_mean_fusion_kernel(H, W, H_pad, W_pad, C_pad):
    Hf, Wf = float(H), float(W)

    def kernel(aff_ref, off_ref, rec_ref, coord_ref, x_ref, o_ref):
        # aff_ref   : SMEM, flat (B*L*6,) f32 normalized 2x3 affines (ego row)
        # off_ref   : SMEM, (B,) int32 start offset of each batch in packed x
        # rec_ref   : SMEM, (B,) int32 record_len
        # coord_ref : VMEM, (8, TQ): row0 xn, row1 yn, row2 dest-validity mask
        # x_ref     : VMEM, (C_pad*H_pad, W_pad) features of cav n in batch b
        # o_ref     : VMEM, (C_pad, TQ) fused output panel (resident accumulator)
        b = pl.program_id(0)
        n = pl.program_id(2)
        L = pl.num_programs(2)
        N = rec_ref[b]

        @pl.when(n == 0)
        def _():
            o_ref[...] = jnp.zeros_like(o_ref)

        @pl.when(n < N)
        def _():
            base = (b * L + n) * 6
            m00 = aff_ref[base + 0]
            m01 = aff_ref[base + 1]
            m02 = aff_ref[base + 2]
            m10 = aff_ref[base + 3]
            m11 = aff_ref[base + 4]
            m12 = aff_ref[base + 5]

            xn = coord_ref[0:1, :]            # (1, TQ)
            yn = coord_ref[1:2, :]
            qv = coord_ref[2:3, :]            # 1.0 for real dest pixels, else 0.0

            gx = m00 * xn + m01 * yn + m02
            gy = m10 * xn + m11 * yn + m12
            # F.grid_sample (align_corners=False): source pixel coordinates
            sx = ((gx + 1.0) * Wf - 1.0) * 0.5
            sy = ((gy + 1.0) * Hf - 1.0) * 0.5
            ix0f = jnp.floor(sx)
            iy0f = jnp.floor(sy)
            fx = sx - ix0f
            fy = sy - iy0f
            ix0 = ix0f.astype(jnp.int32)
            iy0 = iy0f.astype(jnp.int32)

            TQ = o_ref.shape[-1]

            # Per-axis weights with zero-padding validity (and dest-pad mask)
            # folded in.  wx(ix)*wy(iy) == joint bilinear corner weight.
            wx0 = (1.0 - fx) * ((ix0 >= 0) & (ix0 < W)).astype(jnp.float32) * qv
            wx1 = fx * ((ix0 >= -1) & (ix0 < W - 1)).astype(jnp.float32) * qv
            wy0 = (1.0 - fy) * ((iy0 >= 0) & (iy0 < H)).astype(jnp.float32)
            wy1 = fy * ((iy0 >= -1) & (iy0 < H - 1)).astype(jnp.float32)

            # Separable sampling panels: 2 nonzeros per destination column each.
            dx = jax.lax.broadcasted_iota(jnp.int32, (W_pad, TQ), 0) - ix0
            Sx = jnp.where(dx == 0, wx0, 0.0) + jnp.where(dx == 1, wx1, 0.0)
            dy = jax.lax.broadcasted_iota(jnp.int32, (H_pad, TQ), 0) - iy0
            Sy = jnp.where(dy == 0, wy0, 0.0) + jnp.where(dy == 1, wy1, 0.0)

            # MXU: contract the source W axis.  M = C_pad*H_pad (near-full rows).
            # HIGHEST kept: Mosaic dot has no HIGH mode and DEFAULT/bf16 breaks
            # the 2e-4 f32 tolerance; MXU is not the binding unit here.
            T = jnp.dot(x_ref[...], Sx,
                        precision=jax.lax.Precision.HIGHEST,
                        preferred_element_type=jnp.float32)     # (C_pad*H_pad, TQ)

            # VPU: weighted reduce over the source H axis (tile-aligned reshape:
            # H_pad is a multiple of 8, lane dim untouched).
            T3 = T.reshape(C_pad, H_pad, TQ)
            o_ref[...] += jnp.sum(T3 * Sy[None, :, :], axis=1)

        @pl.when(n == L - 1)
        def _():
            # guard N == 0 (would otherwise produce NaN)
            inv = 1.0 / jnp.maximum(N, 1).astype(jnp.float32)
            o_ref[...] = o_ref[...] * inv

    return kernel


# ---------------------------------------------------------------------------
# Python wrapper (glue: normalization, packing/padding, reshapes)
# ---------------------------------------------------------------------------
def mean_fusion_forward(x, record_len_list, pairwise_t_matrix,
                        voxel_size, downsample_rate, max_dst_tile=None):
    """x: (sum(n_cav), C, H, W) f32; pairwise_t_matrix: (B, L, L, 4, 4) f32."""
    _, C, H, W = x.shape
    B, L = pairwise_t_matrix.shape[:2]
    HW = H * W
    discrete_ratio = voxel_size[0]

    # --- normalize the pairwise transforms exactly like the PyTorch forward ---
    pt = pairwise_t_matrix[:, :, :, jnp.array([0, 1]), :][:, :, :, :, jnp.array([0, 1, 3])]
    pt = pt.at[..., 0, 1].multiply(H / W)
    pt = pt.at[..., 1, 0].multiply(W / H)
    pt = pt.at[..., 0, 2].set(pt[..., 0, 2] / (downsample_rate * discrete_ratio * W) * 2)
    pt = pt.at[..., 1, 2].set(pt[..., 1, 2] / (downsample_rate * discrete_ratio * H) * 2)
    # Only the ego row (i == 0) is used by the fusion: (B, L, 2, 3) -> flat
    aff_flat = pt[:, 0].astype(jnp.float32).reshape(-1)          # (B*L*6,)

    # --- padding / tiling parameters ---
    C_pad = _round_up(C, 8)          # sublane-dense output tiles
    H_pad = _round_up(H, 8)          # tile-aligned (C, H) merge / split
    W_pad = _round_up(W, 128)        # lane-dense x loads, MXU K dimension
    HW_pad = _round_up(HW, 128)      # lane-dense output stores
    CH = C_pad * H_pad

    TQ, vmem_limit = _size_kernel(HW_pad, CH, W_pad, H_pad, C_pad, B, max_dst_tile)
    NQ = HW_pad // TQ

    # --- packed features (no zero-padded cav slots), reshaped to (CH, W_pad) ---
    xs = x.astype(jnp.float32).reshape(-1, C, H, W)
    xs = jnp.pad(xs, ((0, 0), (0, C_pad - C), (0, H_pad - H), (0, W_pad - W)))
    xs = xs.reshape(-1, CH, W_pad)

    rec_np = np.asarray(record_len_list, np.int64)
    offs_np = np.concatenate([[0], np.cumsum(rec_np)[:-1]]).astype(np.int32)
    rec = jnp.asarray(rec_np, dtype=jnp.int32)
    offs = jnp.asarray(offs_np)

    # --- destination normalized coords (align_corners=False) + validity mask ---
    q = np.arange(HW_pad)
    qw = (q % W).astype(np.float32)
    qh = (q // W).astype(np.float32)
    coord_np = np.zeros((8, HW_pad), np.float32)
    coord_np[0] = (2.0 * qw + 1.0) / W - 1.0
    coord_np[1] = (2.0 * qh + 1.0) / H - 1.0
    coord_np[2] = (q < HW).astype(np.float32)      # padded dest columns -> 0
    coord = jnp.asarray(coord_np)

    kernel = _make_mean_fusion_kernel(H, W, H_pad, W_pad, C_pad)
    grid_spec = pltpu.PrefetchScalarGridSpec(
        num_scalar_prefetch=3,
        grid=(B, NQ, L),
        in_specs=[
            # destination coord panel
            pl.BlockSpec((8, TQ), lambda b, qi, n, aff, off, rc: (0, qi)),
            # packed features: per-batch offset + cav index, clamped for n >= N
            # (the pl.when(n < N) guard makes the clamped block a no-op; the
            # clamped index also repeats, so padded cav slots cause no extra DMA)
            pl.BlockSpec(
                (None, CH, W_pad),
                lambda b, qi, n, aff, off, rc: (
                    off[b] + jnp.minimum(n, jnp.maximum(rc[b] - 1, 0)), 0, 0)),
        ],
        out_specs=pl.BlockSpec(
            (None, C_pad, TQ), lambda b, qi, n, aff, off, rc: (b, 0, qi)),
    )
    out = pl.pallas_call(
        kernel,
        out_shape=jax.ShapeDtypeStruct((B, C_pad, HW_pad), jnp.float32),
        grid_spec=grid_spec,
        compiler_params=pltpu.CompilerParams(
            dimension_semantics=("parallel", "parallel", "arbitrary"),
            vmem_limit_bytes=vmem_limit),
    )(aff_flat, offs, rec, coord, xs)

    return out[:, :C, :HW].reshape(B, C, H, W)


# ---------------------------------------------------------------------------
# Pure numpy reference (mirrors torch semantics) for verification
# ---------------------------------------------------------------------------
def _ref_warp(src, M, H, W):
    C = src.shape[0]
    out = np.zeros((C, H, W), np.float32)
    for h in range(H):
        for w in range(W):
            xn = (2 * w + 1) / W - 1.0
            yn = (2 * h + 1) / H - 1.0
            gx = M[0, 0] * xn + M[0, 1] * yn + M[0, 2]
            gy = M[1, 0] * xn + M[1, 1] * yn + M[1, 2]
            sx = ((gx + 1) * W - 1) / 2
            sy = ((gy + 1) * H - 1) / 2
            ix0 = int(np.floor(sx)); iy0 = int(np.floor(sy))
            fx = sx - ix0; fy = sy - iy0
            val = np.zeros((C,), np.float32)
            for (iy, ix, wt) in [(iy0, ix0, (1 - fy) * (1 - fx)),
                                 (iy0, ix0 + 1, (1 - fy) * fx),
                                 (iy0 + 1, ix0, fy * (1 - fx)),
                                 (iy0 + 1, ix0 + 1, fy * fx)]:
                if 0 <= iy < H and 0 <= ix < W:
                    val += np.float32(wt) * src[:, iy, ix]
            out[:, h, w] = val
    return out


def reference_forward(x, record_len_list, pt4, voxel_size, downsample_rate):
    x = np.asarray(x, np.float32)
    pt4 = np.asarray(pt4, np.float32)
    _, C, H, W = x.shape
    B, L = pt4.shape[:2]
    discrete_ratio = voxel_size[0]
    pt = pt4[:, :, :, [0, 1], :][:, :, :, :, [0, 1, 3]].copy()
    pt[..., 0, 1] *= H / W
    pt[..., 1, 0] *= W / H
    pt[..., 0, 2] = pt[..., 0, 2] / (downsample_rate * discrete_ratio * W) * 2
    pt[..., 1, 2] = pt[..., 1, 2] / (downsample_rate * discrete_ratio * H) * 2
    splits = np.split(x, np.cumsum(record_len_list)[:-1], axis=0)
    outs = []
    for b in range(B):
        N = record_len_list[b]
        feats = splits[b]
        warped = np.stack([_ref_warp(feats[n], pt[b, 0, n], H, W) for n in range(N)])
        outs.append(warped.mean(axis=0))
    return np.stack(outs)


# ---------------------------------------------------------------------------
if __name__ == "__main__":
    B, L, C, H, W = 2, 4, 4, 16, 16
    record_len_list = [3, 2]
    voxel_size = [0.4, 0.4, 4.0]     # deterministic "args" from the module __init__
    downsample_rate = 2

    key = jax.random.PRNGKey(0)
    k1, k2, k3 = jax.random.split(key, 3)
    x = jax.random.normal(k1, (sum(record_len_list), C, H, W), jnp.float32)

    # Near-identity 4x4 pairwise transforms (small rotation + small translation).
    ang = jax.random.uniform(k2, (B, L, L), minval=-0.1, maxval=0.1)
    trn = jax.random.uniform(k3, (B, L, L, 2), minval=-2.0, maxval=2.0)
    pt4 = jnp.tile(jnp.eye(4, dtype=jnp.float32), (B, L, L, 1, 1))
    pt4 = pt4.at[..., 0, 0].set(jnp.cos(ang))
    pt4 = pt4.at[..., 0, 1].set(-jnp.sin(ang))
    pt4 = pt4.at[..., 1, 0].set(jnp.sin(ang))
    pt4 = pt4.at[..., 1, 1].set(jnp.cos(ang))
    pt4 = pt4.at[..., 0, 3].set(trn[..., 0])
    pt4 = pt4.at[..., 1, 3].set(trn[..., 1])

    ref = reference_forward(x, record_len_list, pt4, voxel_size, downsample_rate)

    # Auto-sized destination panel (NQ = 1 at this size).
    out = mean_fusion_forward(x, record_len_list, pt4, voxel_size, downsample_rate)
    out = jax.block_until_ready(out)
    np.testing.assert_allclose(np.asarray(out), ref, rtol=2e-4, atol=2e-4)

    # Force panel tiling (NQ = 2) so the destination grid axis is exercised.
    out2 = mean_fusion_forward(x, record_len_list, pt4, voxel_size,
                               downsample_rate, max_dst_tile=128)
    out2 = jax.block_until_ready(out2)
    np.testing.assert_allclose(np.asarray(out2), ref, rtol=2e-4, atol=2e-4)

    assert out.shape == (B, C, H, W)
    print("KERNEL_OK")
</pallas_src>

<mosaic_0001>
module attributes {stable_mosaic.version = 11 : i64} {
  func.func @kernel(%arg0: i32, %arg1: i32, %arg2: i32, %arg3: memref<48xf32, #tpu.memory_space<smem>>, %arg4: memref<2xi32, #tpu.memory_space<smem>>, %arg5: memref<2xi32, #tpu.memory_space<smem>>, %arg6: memref<8x256xf32, #tpu.memory_space<vmem>>, %arg7: memref<1x128x128xf32, #tpu.memory_space<vmem>>, %arg8: memref<1x8x256xf32, #tpu.memory_space<vmem>>) attributes {dimension_semantics = [#tpu.dimension_semantics<parallel>, #tpu.dimension_semantics<parallel>, #tpu.dimension_semantics<arbitrary>], iteration_bounds = array<i64: 2, 1, 4>, scalar_prefetch = 3 : i64, scratch_operands = 0 : i64, tpu.core_type = #tpu.core_type<tc>, window_params = [{transform_indices = @transform_0, window_bounds = array<i64: 8, 256>}, {transform_indices = @transform_1, window_bounds = array<i64: 1, 128, 128>}, {transform_indices = @transform_2, window_bounds = array<i64: 1, 8, 256>}]} {
    %0 = arith.index_cast %arg0 : i32 to index
    %1 = memref.load %arg5[%0] : memref<2xi32, #tpu.memory_space<smem>>
    %c0_i32 = arith.constant 0 : i32
    %2 = arith.cmpi eq, %arg2, %c0_i32 : i32
    %3 = arith.extui %2 : i1 to i32
    %c0_i32_0 = arith.constant 0 : i32
    %4 = arith.cmpi ne, %3, %c0_i32_0 : i32
    scf.if %4 {
      %cst = arith.constant 0.000000e+00 : f32
      %11 = vector.broadcast %cst : f32 to vector<8x256xf32>
      %c0 = arith.constant 0 : index
      %c0_3 = arith.constant 0 : index
      %c0_4 = arith.constant 0 : index
      %12 = vector.load %arg8[%c0, %c0_3, %c0_4] : memref<1x8x256xf32, #tpu.memory_space<vmem>>, vector<1x8x256xf32>
      %13 = vector.shape_cast %12 : vector<1x8x256xf32> to vector<8x256xf32>
      %14 = vector.shape_cast %11 : vector<8x256xf32> to vector<1x8x256xf32>
      tpu.vector_store %arg8[%c0, %c0_3, %c0_4], %14 {strides = array<i32>} : memref<1x8x256xf32, #tpu.memory_space<vmem>>, vector<1x8x256xf32>,
    } else {
    }
    %5 = arith.cmpi slt, %arg2, %1 : i32
    %6 = arith.extui %5 : i1 to i32
    %c0_i32_1 = arith.constant 0 : i32
    %7 = arith.cmpi ne, %6, %c0_i32_1 : i32
    scf.if %7 {
      %c4_i32 = arith.constant 4 : i32
      %11 = arith.muli %arg0, %c4_i32 : i32
      %12 = arith.addi %11, %arg2 : i32
      %c6_i32 = arith.constant 6 : i32
      %13 = arith.muli %12, %c6_i32 : i32
      %c0_i32_3 = arith.constant 0 : i32
      %14 = arith.addi %13, %c0_i32_3 : i32
      %15 = arith.index_cast %14 : i32 to index
      %16 = memref.load %arg3[%15] : memref<48xf32, #tpu.memory_space<smem>>
      %c1_i32 = arith.constant 1 : i32
      %17 = arith.addi %13, %c1_i32 : i32
      %18 = arith.index_cast %17 : i32 to index
      %19 = memref.load %arg3[%18] : memref<48xf32, #tpu.memory_space<smem>>
      %c2_i32 = arith.constant 2 : i32
      %20 = arith.addi %13, %c2_i32 : i32
      %21 = arith.index_cast %20 : i32 to index
      %22 = memref.load %arg3[%21] : memref<48xf32, #tpu.memory_space<smem>>
      %c3_i32_4 = arith.constant 3 : i32
      %23 = arith.addi %13, %c3_i32_4 : i32
      %24 = arith.index_cast %23 : i32 to index
      %25 = memref.load %arg3[%24] : memref<48xf32, #tpu.memory_space<smem>>
      %c4_i32_5 = arith.constant 4 : i32
      %26 = arith.addi %13, %c4_i32_5 : i32
      %27 = arith.index_cast %26 : i32 to index
      %28 = memref.load %arg3[%27] : memref<48xf32, #tpu.memory_space<smem>>
      %c5_i32 = arith.constant 5 : i32
      %29 = arith.addi %13, %c5_i32 : i32
      %30 = arith.index_cast %29 : i32 to index
      %31 = memref.load %arg3[%30] : memref<48xf32, #tpu.memory_space<smem>>
      %c0 = arith.constant 0 : index
      %c0_6 = arith.constant 0 : index
      %32 = vector.load %arg6[%c0, %c0_6] : memref<8x256xf32, #tpu.memory_space<vmem>>, vector<1x256xf32>
      %c1 = arith.constant 1 : index
      %c0_7 = arith.constant 0 : index
      %33 = vector.load %arg6[%c1, %c0_7] : memref<8x256xf32, #tpu.memory_space<vmem>>, vector<1x256xf32>
      %c2 = arith.constant 2 : index
      %c0_8 = arith.constant 0 : index
      %34 = vector.load %arg6[%c2, %c0_8] : memref<8x256xf32, #tpu.memory_space<vmem>>, vector<1x256xf32>
      %35 = vector.broadcast %16 : f32 to vector<1x256xf32>
      %36 = arith.mulf %35, %32 : vector<1x256xf32>
      %37 = vector.broadcast %19 : f32 to vector<1x256xf32>
      %38 = arith.mulf %37, %33 : vector<1x256xf32>
      %39 = arith.addf %36, %38 : vector<1x256xf32>
      %40 = vector.broadcast %22 : f32 to vector<1x256xf32>
      %41 = arith.addf %39, %40 : vector<1x256xf32>
      %42 = vector.broadcast %25 : f32 to vector<1x256xf32>
      %43 = arith.mulf %42, %32 : vector<1x256xf32>
      %44 = vector.broadcast %28 : f32 to vector<1x256xf32>
      %45 = arith.mulf %44, %33 : vector<1x256xf32>
      %46 = arith.addf %43, %45 : vector<1x256xf32>
      %47 = vector.broadcast %31 : f32 to vector<1x256xf32>
      %48 = arith.addf %46, %47 : vector<1x256xf32>
      %cst = arith.constant 1.000000e+00 : f32
      %49 = vector.broadcast %cst : f32 to vector<1x256xf32>
      %50 = arith.addf %41, %49 : vector<1x256xf32>
      %cst_9 = arith.constant 1.600000e+01 : f32
      %51 = vector.broadcast %cst_9 : f32 to vector<1x256xf32>
      %52 = arith.mulf %50, %51 : vector<1x256xf32>
      %cst_10 = arith.constant 1.000000e+00 : f32
      %53 = vector.broadcast %cst_10 : f32 to vector<1x256xf32>
      %54 = arith.subf %52, %53 : vector<1x256xf32>
      %cst_11 = arith.constant 5.000000e-01 : f32
      %55 = vector.broadcast %cst_11 : f32 to vector<1x256xf32>
      %56 = arith.mulf %54, %55 : vector<1x256xf32>
      %cst_12 = arith.constant 1.000000e+00 : f32
      %57 = vector.broadcast %cst_12 : f32 to vector<1x256xf32>
      %58 = arith.addf %48, %57 : vector<1x256xf32>
      %cst_13 = arith.constant 1.600000e+01 : f32
      %59 = vector.broadcast %cst_13 : f32 to vector<1x256xf32>
      %60 = arith.mulf %58, %59 : vector<1x256xf32>
      %cst_14 = arith.constant 1.000000e+00 : f32
      %61 = vector.broadcast %cst_14 : f32 to vector<1x256xf32>
      %62 = arith.subf %60, %61 : vector<1x256xf32>
      %cst_15 = arith.constant 5.000000e-01 : f32
      %63 = vector.broadcast %cst_15 : f32 to vector<1x256xf32>
      %64 = arith.mulf %62, %63 : vector<1x256xf32>
      %65 = math.floor %56 : vector<1x256xf32>
      %66 = math.floor %64 : vector<1x256xf32>
      %67 = arith.subf %56, %65 : vector<1x256xf32>
      %68 = arith.subf %64, %66 : vector<1x256xf32>
      %69 = arith.fptosi %65 : vector<1x256xf32> to vector<1x256xi32>
      %70 = arith.fptosi %66 : vector<1x256xf32> to vector<1x256xi32>
      %cst_16 = arith.constant 1.000000e+00 : f32
      %71 = vector.broadcast %cst_16 : f32 to vector<1x256xf32>
      %72 = arith.subf %71, %67 : vector<1x256xf32>
      %c0_i32_17 = arith.constant 0 : i32
      %73 = vector.broadcast %c0_i32_17 : i32 to vector<1x256xi32>
      %74 = arith.cmpi sge, %69, %73 : vector<1x256xi32>
      %c16_i32 = arith.constant 16 : i32
      %75 = vector.broadcast %c16_i32 : i32 to vector<1x256xi32>
      %76 = arith.cmpi slt, %69, %75 : vector<1x256xi32>
      %77 = arith.andi %74, %76 : vector<1x256xi1>
      %78 = arith.extui %77 : vector<1x256xi1> to vector<1x256xi32>
      %79 = arith.sitofp %78 : vector<1x256xi32> to vector<1x256xf32>
      %80 = arith.mulf %72, %79 : vector<1x256xf32>
      %81 = arith.mulf %80, %34 : vector<1x256xf32>
      %c-1_i32 = arith.constant -1 : i32
      %82 = vector.broadcast %c-1_i32 : i32 to vector<1x256xi32>
      %83 = arith.cmpi sge, %69, %82 : vector<1x256xi32>
      %c15_i32 = arith.constant 15 : i32
      %84 = vector.broadcast %c15_i32 : i32 to vector<1x256xi32>
      %85 = arith.cmpi slt, %69, %84 : vector<1x256xi32>
      %86 = arith.andi %83, %85 : vector<1x256xi1>
      %87 = arith.extui %86 : vector<1x256xi1> to vector<1x256xi32>
      %88 = arith.sitofp %87 : vector<1x256xi32> to vector<1x256xf32>
      %89 = arith.mulf %67, %88 : vector<1x256xf32>
      %90 = arith.mulf %89, %34 : vector<1x256xf32>
      %cst_18 = arith.constant 1.000000e+00 : f32
      %91 = vector.broadcast %cst_18 : f32 to vector<1x256xf32>
      %92 = arith.subf %91, %68 : vector<1x256xf32>
      %c0_i32_19 = arith.constant 0 : i32
      %93 = vector.broadcast %c0_i32_19 : i32 to vector<1x256xi32>
      %94 = arith.cmpi sge, %70, %93 : vector<1x256xi32>
      %c16_i32_20 = arith.constant 16 : i32
      %95 = vector.broadcast %c16_i32_20 : i32 to vector<1x256xi32>
      %96 = arith.cmpi slt, %70, %95 : vector<1x256xi32>
      %97 = arith.andi %94, %96 : vector<1x256xi1>
      %98 = arith.extui %97 : vector<1x256xi1> to vector<1x256xi32>
      %99 = arith.sitofp %98 : vector<1x256xi32> to vector<1x256xf32>
      %100 = arith.mulf %92, %99 : vector<1x256xf32>
      %c-1_i32_21 = arith.constant -1 : i32
      %101 = vector.broadcast %c-1_i32_21 : i32 to vector<1x256xi32>
      %102 = arith.cmpi sge, %70, %101 : vector<1x256xi32>
      %c15_i32_22 = arith.constant 15 : i32
      %103 = vector.broadcast %c15_i32_22 : i32 to vector<1x256xi32>
      %104 = arith.cmpi slt, %70, %103 : vector<1x256xi32>
      %105 = arith.andi %102, %104 : vector<1x256xi1>
      %106 = arith.extui %105 : vector<1x256xi1> to vector<1x256xi32>
      %107 = arith.sitofp %106 : vector<1x256xi32> to vector<1x256xf32>
      %108 = arith.mulf %68, %107 : vector<1x256xf32>
      %109 = tpu.iota {dimensions = array<i32: 0>} : vector<128x256xi32>
      %110 = vector.broadcast %69 : vector<1x256xi32> to vector<128x256xi32>
      %111 = arith.subi %109, %110 : vector<128x256xi32>
      %c0_i32_23 = arith.constant 0 : i32
      %112 = vector.broadcast %c0_i32_23 : i32 to vector<128x256xi32>
      %113 = arith.cmpi eq, %111, %112 : vector<128x256xi32>
      %cst_24 = arith.constant 0.000000e+00 : f32
      %114 = vector.shape_cast %81 : vector<1x256xf32> to vector<1x256xf32>
      %115 = vector.broadcast %114 : vector<1x256xf32> to vector<128x256xf32>
      %116 = vector.broadcast %cst_24 : f32 to vector<128x256xf32>
      %117 = arith.select %113, %115, %116 : vector<128x256xi1>, vector<128x256xf32>
      %c1_i32_25 = arith.constant 1 : i32
      %118 = vector.broadcast %c1_i32_25 : i32 to vector<128x256xi32>
      %119 = arith.cmpi eq, %111, %118 : vector<128x256xi32>
      %cst_26 = arith.constant 0.000000e+00 : f32
      %120 = vector.shape_cast %90 : vector<1x256xf32> to vector<1x256xf32>
      %121 = vector.broadcast %120 : vector<1x256xf32> to vector<128x256xf32>
      %122 = vector.broadcast %cst_26 : f32 to vector<128x256xf32>
      %123 = arith.select %119, %121, %122 : vector<128x256xi1>, vector<128x256xf32>
      %124 = arith.addf %117, %123 : vector<128x256xf32>
      %125 = tpu.iota {dimensions = array<i32: 0>} : vector<16x256xi32>
      %126 = vector.broadcast %70 : vector<1x256xi32> to vector<16x256xi32>
      %127 = arith.subi %125, %126 : vector<16x256xi32>
      %c0_i32_27 = arith.constant 0 : i32
      %128 = vector.broadcast %c0_i32_27 : i32 to vector<16x256xi32>
      %129 = arith.cmpi eq, %127, %128 : vector<16x256xi32>
      %cst_28 = arith.constant 0.000000e+00 : f32
      %130 = vector.shape_cast %100 : vector<1x256xf32> to vector<1x256xf32>
      %131 = vector.broadcast %130 : vector<1x256xf32> to vector<16x256xf32>
      %132 = vector.broadcast %cst_28 : f32 to vector<16x256xf32>
      %133 = arith.select %129, %131, %132 : vector<16x256xi1>, vector<16x256xf32>
      %c1_i32_29 = arith.constant 1 : i32
      %134 = vector.broadcast %c1_i32_29 : i32 to vector<16x256xi32>
      %135 = arith.cmpi eq, %127, %134 : vector<16x256xi32>
      %cst_30 = arith.constant 0.000000e+00 : f32
      %136 = vector.shape_cast %108 : vector<1x256xf32> to vector<1x256xf32>
      %137 = vector.broadcast %136 : vector<1x256xf32> to vector<16x256xf32>
      %138 = vector.broadcast %cst_30 : f32 to vector<16x256xf32>
      %139 = arith.select %135, %137, %138 : vector<16x256xi1>, vector<16x256xf32>
      %140 = arith.addf %133, %139 : vector<16x256xf32>
      %c0_31 = arith.constant 0 : index
      %c0_32 = arith.constant 0 : index
      %c0_33 = arith.constant 0 : index
      %141 = vector.load %arg7[%c0_31, %c0_32, %c0_33] : memref<1x128x128xf32, #tpu.memory_space<vmem>>, vector<1x128x128xf32>
      %142 = vector.shape_cast %141 : vector<1x128x128xf32> to vector<128x128xf32>
      %cst_34 = arith.constant dense<0.000000e+00> : vector<128x256xf32>
      %143 = tpu.matmul %142, %124, %cst_34 {dimension_numbers = #tpu.dot_dimension_numbers<[1], [0], [0], [1], [0, 0, 1, 1], [], []>, precision = #tpu.contract_precision<fp32>} : vector<128x128xf32>, vector<128x256xf32>, vector<128x256xf32> -> vector<128x256xf32>
      %144 = vector.shape_cast %143 : vector<128x256xf32> to vector<8x16x256xf32>
      %c0_35 = arith.constant 0 : index
      %c0_36 = arith.constant 0 : index
      %c0_37 = arith.constant 0 : index
      %145 = vector.load %arg8[%c0_35, %c0_36, %c0_37] : memref<1x8x256xf32, #tpu.memory_space<vmem>>, vector<1x8x256xf32>
      %146 = vector.shape_cast %145 : vector<1x8x256xf32> to vector<8x256xf32>
      %147 = vector.shape_cast %140 : vector<16x256xf32> to vector<1x16x256xf32>
      %148 = vector.broadcast %147 : vector<1x16x256xf32> to vector<8x16x256xf32>
      %149 = arith.mulf %144, %148 : vector<8x16x256xf32>
      %cst_38 = arith.constant dense<0.000000e+00> : vector<8x256xf32>
      %150 = vector.multi_reduction <add>, %149, %cst_38 [1] : vector<8x16x256xf32> to vector<8x256xf32>
      %151 = arith.addf %146, %150 : vector<8x256xf32>
      %c0_39 = arith.constant 0 : index
      %c0_40 = arith.constant 0 : index
      %c0_41 = arith.constant 0 : index
      %152 = vector.load %arg8[%c0_39, %c0_40, %c0_41] : memref<1x8x256xf32, #tpu.memory_space<vmem>>, vector<1x8x256xf32>
      %153 = vector.shape_cast %152 : vector<1x8x256xf32> to vector<8x256xf32>
      %154 = vector.shape_cast %151 : vector<8x256xf32> to vector<1x8x256xf32>
      tpu.vector_store %arg8[%c0_39, %c0_40, %c0_41], %154 {strides = array<i32>} : memref<1x8x256xf32, #tpu.memory_space<vmem>>, vector<1x8x256xf32>,
    } else {
    }
    %c3_i32 = arith.constant 3 : i32
    %8 = arith.cmpi eq, %arg2, %c3_i32 : i32
    %9 = arith.extui %8 : i1 to i32
    %c0_i32_2 = arith.constant 0 : i32
    %10 = arith.cmpi ne, %9, %c0_i32_2 : i32
    scf.if %10 {
      %c1_i32 = arith.constant 1 : i32
      %11 = arith.maxsi %1, %c1_i32 : i32
      %12 = arith.sitofp %11 : i32 to f32
      %cst = arith.constant 1.000000e+00 : f32
      %13 = arith.divf %cst, %12 : f32
      %c0 = arith.constant 0 : index
      %c0_3 = arith.constant 0 : index
      %c0_4 = arith.constant 0 : index
      %14 = vector.load %arg8[%c0, %c0_3, %c0_4] : memref<1x8x256xf32, #tpu.memory_space<vmem>>, vector<1x8x256xf32>
      %15 = vector.shape_cast %14 : vector<1x8x256xf32> to vector<8x256xf32>
      %16 = vector.broadcast %13 : f32 to vector<8x256xf32>
      %17 = arith.mulf %15, %16 : vector<8x256xf32>
      %c0_5 = arith.constant 0 : index
      %c0_6 = arith.constant 0 : index
      %c0_7 = arith.constant 0 : index
      %18 = vector.load %arg8[%c0_5, %c0_6, %c0_7] : memref<1x8x256xf32, #tpu.memory_space<vmem>>, vector<1x8x256xf32>
      %19 = vector.shape_cast %18 : vector<1x8x256xf32> to vector<8x256xf32>
      %20 = vector.shape_cast %17 : vector<8x256xf32> to vector<1x8x256xf32>
      tpu.vector_store %arg8[%c0_5, %c0_6, %c0_7], %20 {strides = array<i32>} : memref<1x8x256xf32, #tpu.memory_space<vmem>>, vector<1x8x256xf32>,
    } else {
    }
    return
  }
  func.func @transform_0(%arg0: i32, %arg1: i32, %arg2: i32, %arg3: memref<48xf32, #tpu.memory_space<smem>>, %arg4: memref<2xi32, #tpu.memory_space<smem>>, %arg5: memref<2xi32, #tpu.memory_space<smem>>) -> (i32, i32) {
    %c0_i32 = arith.constant 0 : i32
    %c0_i32_0 = arith.constant 0 : i32
    return %c0_i32, %arg1 : i32, i32
  }
  func.func @transform_1(%arg0: i32, %arg1: i32, %arg2: i32, %arg3: memref<48xf32, #tpu.memory_space<smem>>, %arg4: memref<2xi32, #tpu.memory_space<smem>>, %arg5: memref<2xi32, #tpu.memory_space<smem>>) -> (i32, i32, i32) {
    %0 = arith.index_cast %arg0 : i32 to index
    %1 = memref.load %arg4[%0] : memref<2xi32, #tpu.memory_space<smem>>
    %2 = arith.index_cast %arg0 : i32 to index
    %3 = memref.load %arg5[%2] : memref<2xi32, #tpu.memory_space<smem>>
    %c1_i32 = arith.constant 1 : i32
    %4 = arith.subi %3, %c1_i32 : i32
    %c0_i32 = arith.constant 0 : i32
    %5 = arith.maxsi %4, %c0_i32 : i32
    %6 = arith.minsi %arg2, %5 : i32
    %7 = arith.addi %1, %6 : i32
    %c0_i32_0 = arith.constant 0 : i32
    %c0_i32_1 = arith.constant 0 : i32
    %c0_i32_2 = arith.constant 0 : i32
    return %7, %c0_i32_0, %c0_i32_1 : i32, i32, i32
  }
  func.func @transform_2(%arg0: i32, %arg1: i32, %arg2: i32, %arg3: memref<48xf32, #tpu.memory_space<smem>>, %arg4: memref<2xi32, #tpu.memory_space<smem>>, %arg5: memref<2xi32, #tpu.memory_space<smem>>) -> (i32, i32, i32) {
    %c0_i32 = arith.constant 0 : i32
    %c0_i32_0 = arith.constant 0 : i32
    return %arg0, %c0_i32, %arg1 : i32, i32, i32
  }
}

</mosaic_0001>

<llo_original>
// kernel: tpu_custom_call.1
$region0: #{tpu_custom_call.1}
  #allocation0 [shape = 'u32[]', space=smem, size = 0x4, offset = 0x4, fixed_abs, tag = 'smem constant byte address 0x4 - core index']
  #allocation1 [shape = 'u32[144,128]{1,0:T(1,128)}', space=vmem, size = 0x12000, scoped, tag = 'internal scratch']
  #allocation2 [shape = 's32[1]{0}', space=sflag, size = 0x4, scoped, tag = 'scoped memory for tpu_custom_call.1']
  #allocation3 [shape = 'u8[512]{0}', space=smem, size = 0x200, scoped, tag = 'prefetched SMEM operand 0']
  #allocation4 [shape = 'u8[512]{0}', space=smem, size = 0x200, scoped, tag = 'prefetched SMEM operand 1']
  #allocation5 [shape = 'u8[512]{0}', space=smem, size = 0x200, scoped, tag = 'prefetched SMEM operand 2']
  %s0 = inlined_call_operand.hbm [shape: f32[48], index: 0, kind: input, shape index: {}]
  %s1 = inlined_call_operand.vmem [shape: s32[2], index: 1, kind: input, shape index: {}]
  %s2 = inlined_call_operand.vmem [shape: s32[2], index: 2, kind: input, shape index: {}]
  %s3 = inlined_call_operand.hbm [shape: f32[8,256], index: 3, kind: input, shape index: {}]
  %s4 = inlined_call_operand.hbm [shape: f32[5,128,128], index: 4, kind: input, shape index: {}]
  %s5 = inlined_call_operand.hbm [shape: f32[2,8,256], index: 5, kind: output, shape index: {}]
  %s6 = sld [smem:[#allocation0]]
  $region61: #{tpu_custom_call.1} parent=0
    _
  %s8 = ssub.s32 1, %s6
  %s9 = scalar_select 0, %s8, %s6
  %11 = dma.hbm_to_smem %s0, 16, [#allocation3], [#allocation2]
  %s12 = sshll.u32 %s1, 4
  %s13 = int_to_ptr.vmem [resolvable:$true] %s12
  %15 = dma.vmem_to_smem %s13, 16, [#allocation4], [#allocation2]
  %s16 = sshll.u32 %s2, 4
  %s17 = int_to_ptr.vmem [resolvable:$true] %s16
  %19 = dma.vmem_to_smem %s17, 16, [#allocation5], [#allocation2]
  %20 = dma.done [#allocation2], 48
  %21 = sfence
  $region1: #{tpu_custom_call.1} parent=0
    #allocation6 [shape = 'u8[8192]{0}', space=vmem, size = 0x2000, scoped, tag = 'input window, operand 3, single buffered']
    #allocation7 [shape = 's32[2]{0}', space=sflag, size = 0x8, scoped, tag = 'scoped memory for tpu_custom_call.1']
    #allocation8 [shape = 's32[2]{0}', space=sflag, size = 0x8, scoped, tag = 'scoped memory for tpu_custom_call.1']
    #allocation9 [shape = 'u8[131072]{0}', space=vmem, size = 0x20000, scoped, tag = 'input window, operand 4']
    #allocation10 [shape = 's32[2]{0}', space=sflag, size = 0x8, scoped, tag = 'scoped memory for tpu_custom_call.1']
    #allocation11 [shape = 'u8[16384]{0}', space=vmem, size = 0x4000, scoped, tag = 'output window, operand 0']
    %22 = vsyncpa [#allocation7], 0
    %23 = vsyncpa [#allocation10], 0
    %s24 = scalar_lea.sflag [#allocation10], 1
    %25 = vsyncpa %s24, 0
    %26 = vsyncpa [#allocation8], 0
    %s27 = scalar_lea.sflag [#allocation8], 1
    %28 = vsyncpa %s27, 0
    loop: start=0, step=1, limit=10
    $region2: #{tpu_custom_call.1} parent=1 // loop_pre_header
      _
    $region3: #{tpu_custom_call.1} parent=1 // loop_header
      %s30 = sphi 0, %s34
      %p31 = scmp.ge.s32.totalorder %s30, 10
      %s37 = sphi 0, %s56
      %s38 = sphi 0, %s52
      %s39 = sphi 0, %s48
      %s40 = sphi 0, %s37
      %s41 = sphi 0, %s38
      %s42 = sphi 0, %s39
      %s43 = sphi 0, %s40
      %s44 = sphi 0, %s41
      %s45 = sphi 0, %s42
      %s59 = sphi 0, %s61
      %s62 = sphi 0, %s59
      %s63 = sphi 0, %s62
      %s79 = sphi 0, %s63
      %s101 = sphi 0, %s103
      %s104 = sphi 0, %s101
      %s105 = sphi 0, %s104
      %s121 = sphi 0, %s105
      %s129 = sphi 0, %s131
      %s132 = sphi 0, %s129
      %s133 = sphi 0, %s132
      %s149 = sphi 0, %s133
    $region4: #{tpu_custom_call.1} parent=1 // loop_header_branch
      %33 = sbr.rel (%p31) target = $region8
    $region5: #{tpu_custom_call.1} parent=1 // loop_body
      %s35 = ssub.s32 %s30, 1
      %s36 = ssub.s32 %s30, 2
      %s46 = sadd.s32 1, %s39
      %p47 = scmp.ge.s32.totalorder %s46, 4
      %s48 = scalar_select %p47, 0, %s46
      %s49 = sadd.s32 1, %s38
      %s50 = scalar_select %p47, %s49, %s38
      %p51 = scmp.ge.s32.totalorder %s50, 1
      %s52 = scalar_select %p51, 0, %s50
      %s53 = sadd.s32 1, %s37
      %s54 = scalar_select %p51, %s53, %s37
      %p55 = scmp.ge.s32.totalorder %s54, 2
      %s56 = scalar_select %p55, 0, %s54
      %s57 = ssub.s32 %s38, %s52
      %p58 = scmp.eq.s32.totalorder %s57, 0
      %s60 = sadd.s32 %s59, 1
      %s61 = scalar_select %p58, %s59, %s60
      %p64 = pneg %p58
      %p65 = scmp.eq.s32.totalorder %s30, 7
      %p66 = por %p64, %p65
      %p67 = scmp.ne.s32.totalorder %s59, %s62
      %p68 = scmp.eq.s32.totalorder %s30, 0
      %p69 = por %p67, %p68
      %p70 = scmp.ne.s32.totalorder %s59, %s62
      %p71 = scmp.eq.s32.totalorder %s35, 7
      %p72 = por %p70, %p71
      %p73 = scmp.ne.s32.totalorder %s62, %s63
      %p74 = scmp.eq.s32.totalorder %s35, 0
      %p75 = por %p73, %p74
      %p76 = scmp.ne.s32.totalorder %s62, %s63
      %p77 = scmp.eq.s32.totalorder %s36, 7
      %p78 = por %p76, %p77
      %p80 = scmp.ne.s32.totalorder %s63, %s79
      %p81 = scmp.eq.s32.totalorder %s36, 0
      %p82 = por %p80, %p81
      %s83 = sld [smem:[#allocation4 + %s37]]
      %s84 = sld [smem:[#allocation5 + %s37]]
      %s85 = ssub.s32 %s84, 1
      %p86 = scmp.gt.s32.totalorder %s85, 0
      %s87 = scalar_select %p86, %s85, 0
      %p88 = scmp.lt.s32.totalorder %s39, %s87
      %s89 = scalar_select %p88, %s39, %s87
      %s90 = sadd.s32 %s83, %s89
      %s91 = sld [smem:[#allocation4 + %s56]]
      %s92 = sld [smem:[#allocation5 + %s56]]
      %s93 = ssub.s32 %s92, 1
      %p94 = scmp.gt.s32.totalorder %s93, 0
      %s95 = scalar_select %p94, %s93, 0
      %p96 = scmp.lt.s32.totalorder %s48, %s95
      %s97 = scalar_select %p96, %s48, %s95
      %s98 = sadd.s32 %s91, %s97
      %s99 = ssub.s32 %s90, %s98
      %p100 = scmp.eq.s32.totalorder %s99, 0
      %s102 = sadd.s32 %s101, 1
      %s103 = scalar_select %p100, %s101, %s102
      %p106 = pneg %p100
      %p107 = scmp.eq.s32.totalorder %s30, 7
      %p108 = por %p106, %p107
      %p109 = scmp.ne.s32.totalorder %s101, %s104
      %p110 = scmp.eq.s32.totalorder %s30, 0
      %p111 = por %p109, %p110
      %p112 = scmp.ne.s32.totalorder %s101, %s104
      %p113 = scmp.eq.s32.totalorder %s35, 7
      %p114 = por %p112, %p113
      %p115 = scmp.ne.s32.totalorder %s104, %s105
      %p116 = scmp.eq.s32.totalorder %s35, 0
      %p117 = por %p115, %p116
      %p118 = scmp.ne.s32.totalorder %s104, %s105
      %p119 = scmp.eq.s32.totalorder %s36, 7
      %p120 = por %p118, %p119
      %p122 = scmp.ne.s32.totalorder %s105, %s121
      %p123 = scmp.eq.s32.totalorder %s36, 0
      %p124 = por %p122, %p123
      %s125 = ssub.s32 %s37, %s56
      %s126 = ssub.s32 %s38, %s52
      %s127 = sor.u32 %s125, %s126
      %p128 = scmp.eq.s32.totalorder %s127, 0
      %s130 = sadd.s32 %s129, 1
      %s131 = scalar_select %p128, %s129, %s130
      %p134 = pneg %p128
      %p135 = scmp.eq.s32.totalorder %s30, 7
      %p136 = por %p134, %p135
      %p137 = scmp.ne.s32.totalorder %s129, %s132
      %p138 = scmp.eq.s32.totalorder %s30, 0
      %p139 = por %p137, %p138
      %p140 = scmp.ne.s32.totalorder %s129, %s132
      %p141 = scmp.eq.s32.totalorder %s35, 7
      %p142 = por %p140, %p141
      %p143 = scmp.ne.s32.totalorder %s132, %s133
      %p144 = scmp.eq.s32.totalorder %s35, 0
      %p145 = por %p143, %p144
      %p146 = scmp.ne.s32.totalorder %s132, %s133
      %p147 = scmp.eq.s32.totalorder %s36, 7
      %p148 = por %p146, %p147
      %p150 = scmp.ne.s32.totalorder %s133, %s149
      %p151 = scmp.eq.s32.totalorder %s36, 0
      %p152 = por %p150, %p151
      %p153 = scmp.le.s32.totalorder 1, %s30
      %p154 = scmp.lt.s32.totalorder %s30, 9
      %p155 = pnand %p153, %p154
      %p156 = pneg %p155
      // Predicated region
      $region9: #{tpu_custom_call.1} parent=5 // pred_check
        _
      $region10: #{tpu_custom_call.1} parent=5 // pred_check_branch
        %158 = sbr.rel (%p155) target = $region12
      $region11: #{tpu_custom_call.1} parent=5 // pred_region
        %s159 = ssub.s32 %s30, 1
        // Predicated region
        $region13: #{tpu_custom_call.1} parent=11 // pred_check
          %p160 = pneg %p75
        $region14: #{tpu_custom_call.1} parent=11 // pred_check_branch
          %162 = sbr.rel (%p160) target = $region16
        $region15: #{tpu_custom_call.1} parent=11 // pred_region
          %s163 = smul.u32 2, %s41
          %s165 = ssub.s32 256, 256
          %166 = vsyncadd [#allocation7], %s165
          %s167 = smul.addr %s163, 128
          %s168 = scalar_lea.hbm %s3, %s167
          %s170 = sshll.u32 [#allocation6], 4
          %s171 = int_to_ptr.vmem [resolvable:$true] %s170
          %173 = dma.hbm_to_vmem [thread:$0]  %s168, 256, %s171, [#allocation7]
        $region16: #{tpu_custom_call.1} parent=11 // pred_fallthru
          _
      $region12: #{tpu_custom_call.1} parent=5 // pred_fallthru
        _
      %p174 = scmp.lt.s32.totalorder %s30, 8
      // Predicated region
      $region17: #{tpu_custom_call.1} parent=5 // pred_check
        %p175 = pneg %p174
      $region18: #{tpu_custom_call.1} parent=5 // pred_check_branch
        %177 = sbr.rel (%p175) target = $region20
      $region19: #{tpu_custom_call.1} parent=5 // pred_region
        // Predicated region
        $region21: #{tpu_custom_call.1} parent=19 // pred_check
          %p178 = pneg %p111
        $region22: #{tpu_custom_call.1} parent=19 // pred_check_branch
          %180 = sbr.rel (%p178) target = $region24
        $region23: #{tpu_custom_call.1} parent=19 // pred_region
          %s181 = sand.u32 %s101, 1
          %s182 = scalar_lea.sflag [#allocation10], %s181
          %s183 = sand.u32 %s101, 1
          %s184 = smul.addr %s183, 128
          %s185 = scalar_lea.vmem [#allocation9], %s184
          %s186 = sld [smem:[#allocation4 + %s37]]
          %s187 = sld [smem:[#allocation5 + %s37]]
          %s188 = ssub.s32 %s187, 1
          %p189 = scmp.gt.s32.totalorder %s188, 0
          %s190 = scalar_select %p189, %s188, 0
          %p191 = scmp.lt.s32.totalorder %s39, %s190
          %s192 = scalar_select %p191, %s39, %s190
          %s193 = sadd.s32 %s186, %s192
          %s195 = ssub.s32 2048, 2048
          %196 = vsyncadd %s182, %s195
          %s197 = smul.addr %s193, 16
          %s198 = smul.addr %s197, 128
          %s199 = scalar_lea.hbm %s4, %s198
          %s200 = sshll.u32 %s185, 4
          %s201 = int_to_ptr.vmem [resolvable:$true] %s200
          %206 = dma.hbm_to_vmem [thread:$0]  %s199, 2048, %s201, %s182, 128, 128, 8
        $region24: #{tpu_custom_call.1} parent=19 // pred_fallthru
          _
      $region20: #{tpu_custom_call.1} parent=5 // pred_fallthru
        _
      %p207 = scmp.le.s32.totalorder 1, %s30
      %p208 = scmp.lt.s32.totalorder %s30, 9
      %p209 = pnand %p207, %p208
      %p210 = pneg %p209
      // Predicated region
      $region25: #{tpu_custom_call.1} parent=5 // pred_check
        _
      $region26: #{tpu_custom_call.1} parent=5 // pred_check_branch
        %212 = sbr.rel (%p209) target = $region28
      $region27: #{tpu_custom_call.1} parent=5 // pred_region
        %s213 = ssub.s32 %s30, 1
        // Predicated region
        $region29: #{tpu_custom_call.1} parent=27 // pred_check
          %p214 = pneg %p75
        $region30: #{tpu_custom_call.1} parent=27 // pred_check_branch
          %216 = sbr.rel (%p214) target = $region32
        $region31: #{tpu_custom_call.1} parent=27 // pred_region
          %217 = dma.done [#allocation7], 256
        $region32: #{tpu_custom_call.1} parent=27 // pred_fallthru
          _
        %s218 = sand.u32 %s104, 1
        %s219 = scalar_lea.sflag [#allocation10], %s218
        %s220 = sand.u32 %s104, 1
        %s221 = smul.addr %s220, 128
        %s222 = scalar_lea.vmem [#allocation9], %s221
        // Predicated region
        $region33: #{tpu_custom_call.1} parent=27 // pred_check
          %p223 = pneg %p117
        $region34: #{tpu_custom_call.1} parent=27 // pred_check_branch
          %225 = sbr.rel (%p223) target = $region36
        $region35: #{tpu_custom_call.1} parent=27 // pred_region
          %226 = dma.done %s219, 2048
        $region36: #{tpu_custom_call.1} parent=27 // pred_fallthru
          _
        %p227 = pneg %p75
        %p228 = pneg %p72
        %s229 = sand.u32 %s104, 1
        %s230 = scalar_lea.sflag [#allocation10], %s229
        %s231 = sand.u32 %s104, 1
        %s232 = smul.addr %s231, 128
        %s233 = scalar_lea.vmem [#allocation9], %s232
        %p234 = pneg %p117
        %p235 = pneg %p114
        %p236 = pneg %p145
        %p237 = pneg %p142
        %s238 = sand.u32 %s132, 1
        %s239 = scalar_lea.sflag [#allocation8], %s238
        %s240 = sand.u32 %s132, 1
        %s241 = smul.addr %s240, 16
        %s242 = scalar_lea.vmem [#allocation11], %s241
        %s243 = smul.u32 2, %s41
        %s244 = sld [smem:[#allocation4 + %s40]]
        %s245 = sld [smem:[#allocation5 + %s40]]
        %s246 = ssub.s32 %s245, 1
        %p247 = scmp.gt.s32.totalorder %s246, 0
        %s248 = scalar_select %p247, %s246, 0
        %p249 = scmp.lt.s32.totalorder %s42, %s248
        %s250 = scalar_select %p249, %s42, %s248
        %s251 = sadd.s32 %s244, %s250
        %s252 = smul.u32 2, %s41
        %s253 = sld [smem:[#allocation5 + %s40]]
        %p254 = scmp.eq.s32.totalorder %s42, 0
        // Predicated region
        $region37: #{tpu_custom_call.1} parent=27 // pred_check
          %p255 = pneg %p254
        $region38: #{tpu_custom_call.1} parent=27 // pred_check_branch
          %257 = sbr.rel (%p255) target = $region40
        $region39: #{tpu_custom_call.1} parent=27 // pred_region
          %258 = vst [vmem:[%s242] sm:$0xff] 0.0
          %259 = vst [vmem:[%s242 + $0x8] sm:$0xff] 0.0
        $region40: #{tpu_custom_call.1} parent=27 // pred_fallthru
          _
        %p260 = scmp.lt.s32.totalorder %s42, %s253
        // Predicated region
        $region41: #{tpu_custom_call.1} parent=27 // pred_check
          %p261 = pneg %p260
        $region42: #{tpu_custom_call.1} parent=27 // pred_check_branch
          %263 = sbr.rel (%p261) target = $region44
        $region43: #{tpu_custom_call.1} parent=27 // pred_region
          %s264 = smul.u32 %s40, 4
          %s265 = sadd.s32 %s264, %s42
          %s266 = smul.u32 %s265, 6
          %s267 = sld [smem:[#allocation3 + %s266]]
          %s268 = sadd.s32 %s266, 1
          %s269 = sld [smem:[#allocation3 + %s268]]
          %s270 = sadd.s32 %s266, 2
          %s271 = sld [smem:[#allocation3 + %s270]]
          %s272 = sadd.s32 %s266, 3
          %s273 = sld [smem:[#allocation3 + %s272]]
          %s274 = sadd.s32 %s266, 4
          %s275 = sld [smem:[#allocation3 + %s274]]
          %s276 = sadd.s32 %s266, 5
          %s277 = sld [smem:[#allocation3 + %s276]]
          %v278 = vld [vmem:[#allocation6] ss:$8 sm:$0x3]
          %s279 = scalar_lea.vmem [#allocation6], 1
          %v280 = vld [vmem:[%s279] ss:$8 sm:$0x3]
          %s281 = scalar_lea.vmem [#allocation6], 2
          %v282 = vld [vmem:[%s281] ss:$8 sm:$0x3]
          %v283 = vstv %s267
          %v284 = vmul.f32 %v283, %v278
          %v285 = vstv %s269
          %v286 = vmul.f32 %v285, %v280
          %v287 = vadd.f32 %v284, %v286
          %v288 = vstv %s271
          %v289 = vadd.f32 %v287, %v288
          %v290 = vstv %s273
          %v291 = vmul.f32 %v290, %v278
          %v292 = vstv %s275
          %v293 = vmul.f32 %v292, %v280
          %v294 = vadd.f32 %v291, %v293
          %v295 = vstv %s277
          %v296 = vadd.f32 %v294, %v295
          %v297 = vadd.f32 %v289, 1.0
          %v298 = vmul.f32 %v297, 16.0
          %v299 = vsub.f32 %v298, 1.0
          %v300 = vmul.f32 %v299, 0.5
          %v301 = vadd.f32 %v296, 1.0
          %v302 = vmul.f32 %v301, 16.0
          %v303 = vsub.f32 %v302, 1.0
          %v304 = vmul.f32 %v303, 0.5
          %v305 = vfloor.f32 %v300
          %v306 = vfloor.f32 %v304
          %v307 = vsub.f32 %v300, %v305
          %v308 = vsub.f32 %v304, %v306
          %v309 = vcvt.f32.s32.to.zero.pseudo %v305
          %v310 = vcvt.f32.s32.to.zero.pseudo %v306
          %v311 = vsub.f32 1.0, %v307
          %vm312 = vcmp.ge.s32.totalorder %v309, 0
          %vm313 = vcmp.lt.s32.totalorder %v309, 16
          %vm314 = vmand %vm312, %vm313
          %v315 = vsel %vm314, 1, 0
          %v316 = vcvt.s32.f32 %v315
          %v317 = vmul.f32 %v311, %v316
          %v318 = vmul.f32 %v317, %v282
          %vm319 = vcmp.ge.s32.totalorder %v309, 4294967295
          %vm320 = vcmp.lt.s32.totalorder %v309, 15
          %vm321 = vmand %vm319, %vm320
          %v322 = vsel %vm321, 1, 0
          %v323 = vcvt.s32.f32 %v322
          %v324 = vmul.f32 %v307, %v323
          %v325 = vmul.f32 %v324, %v282
          %v326 = vsub.f32 1.0, %v308
          %vm327 = vcmp.ge.s32.totalorder %v310, 0
          %vm328 = vcmp.lt.s32.totalorder %v310, 16
          %vm329 = vmand %vm327, %vm328
          %v330 = vsel %vm329, 1, 0
          %v331 = vcvt.s32.f32 %v330
          %v332 = vmul.f32 %v326, %v331
          %vm333 = vcmp.ge.s32.totalorder %v310, 4294967295
          %vm334 = vcmp.lt.s32.totalorder %v310, 15
          %vm335 = vmand %vm333, %vm334
          %v336 = vsel %vm335, 1, 0
          %v337 = vcvt.s32.f32 %v336
          %v338 = vmul.f32 %v308, %v337
          %v339 = vlaneseq
          %v340 = vshrl.u32 %v339, 7
          %v341 = vadd.s32 %v340, 8
          %v342 = vadd.s32 %v340, 16
          %v343 = vadd.s32 %v340, 24
          %v344 = vadd.s32 %v340, 32
          %v345 = vadd.s32 %v340, 40
          %v346 = vadd.s32 %v340, 48
          %v347 = vadd.s32 %v340, 56
          %v348 = vadd.s32 %v340, 64
          %v349 = vadd.s32 %v340, 72
          %v350 = vadd.s32 %v340, 80
          %v351 = vadd.s32 %v340, 88
          %v352 = vadd.s32 %v340, 96
          %v353 = vadd.s32 %v340, 104
          %v354 = vadd.s32 %v340, 112
          %v355 = vadd.s32 %v340, 120
          %v356 = vlaneseq
          %v357 = vshrl.u32 %v356, 7
          %v358 = vsub.s32 0, %v357
          %v359 = vrot.slane %v309, %v358
          %v360 = vlaneseq
          %v361 = vshrl.u32 %v360, 7
          %v362 = vsub.s32 1, %v361
          %v363 = vrot.slane %v309, %v362
          %v364 = vsub.s32 %v340, %v359
          %v365 = vsub.s32 %v340, %v363
          %v366 = vsub.s32 %v341, %v359
          %v367 = vsub.s32 %v341, %v363
          %v368 = vsub.s32 %v342, %v359
          %v369 = vsub.s32 %v342, %v363
          %v370 = vsub.s32 %v343, %v359
          %v371 = vsub.s32 %v343, %v363
          %v372 = vsub.s32 %v344, %v359
          %v373 = vsub.s32 %v344, %v363
          %v374 = vsub.s32 %v345, %v359
          %v375 = vsub.s32 %v345, %v363
          %v376 = vsub.s32 %v346, %v359
          %v377 = vsub.s32 %v346, %v363
          %v378 = vsub.s32 %v347, %v359
          %v379 = vsub.s32 %v347, %v363
          %v380 = vsub.s32 %v348, %v359
          %v381 = vsub.s32 %v348, %v363
          %v382 = vsub.s32 %v349, %v359
          %v383 = vsub.s32 %v349, %v363
          %v384 = vsub.s32 %v350, %v359
          %v385 = vsub.s32 %v350, %v363
          %v386 = vsub.s32 %v351, %v359
          %v387 = vsub.s32 %v351, %v363
          %v388 = vsub.s32 %v352, %v359
          %v389 = vsub.s32 %v352, %v363
          %v390 = vsub.s32 %v353, %v359
          %v391 = vsub.s32 %v353, %v363
          %v392 = vsub.s32 %v354, %v359
          %v393 = vsub.s32 %v354, %v363
          %v394 = vsub.s32 %v355, %v359
          %v395 = vsub.s32 %v355, %v363
          %vm396 = vcmp.eq.s32.totalorder %v364, 0
          %vm397 = vcmp.eq.s32.totalorder %v365, 0
          %vm398 = vcmp.eq.s32.totalorder %v366, 0
          %vm399 = vcmp.eq.s32.totalorder %v367, 0
          %vm400 = vcmp.eq.s32.totalorder %v368, 0
          %vm401 = vcmp.eq.s32.totalorder %v369, 0
          %vm402 = vcmp.eq.s32.totalorder %v370, 0
          %vm403 = vcmp.eq.s32.totalorder %v371, 0
          %vm404 = vcmp.eq.s32.totalorder %v372, 0
          %vm405 = vcmp.eq.s32.totalorder %v373, 0
          %vm406 = vcmp.eq.s32.totalorder %v374, 0
          %vm407 = vcmp.eq.s32.totalorder %v375, 0
          %vm408 = vcmp.eq.s32.totalorder %v376, 0
          %vm409 = vcmp.eq.s32.totalorder %v377, 0
          %vm410 = vcmp.eq.s32.totalorder %v378, 0
          %vm411 = vcmp.eq.s32.totalorder %v379, 0
          %vm412 = vcmp.eq.s32.totalorder %v380, 0
          %vm413 = vcmp.eq.s32.totalorder %v381, 0
          %vm414 = vcmp.eq.s32.totalorder %v382, 0
          %vm415 = vcmp.eq.s32.totalorder %v383, 0
          %vm416 = vcmp.eq.s32.totalorder %v384, 0
          %vm417 = vcmp.eq.s32.totalorder %v385, 0
          %vm418 = vcmp.eq.s32.totalorder %v386, 0
          %vm419 = vcmp.eq.s32.totalorder %v387, 0
          %vm420 = vcmp.eq.s32.totalorder %v388, 0
          %vm421 = vcmp.eq.s32.totalorder %v389, 0
          %vm422 = vcmp.eq.s32.totalorder %v390, 0
          %vm423 = vcmp.eq.s32.totalorder %v391, 0
          %vm424 = vcmp.eq.s32.totalorder %v392, 0
          %vm425 = vcmp.eq.s32.totalorder %v393, 0
          %vm426 = vcmp.eq.s32.totalorder %v394, 0
          %vm427 = vcmp.eq.s32.totalorder %v395, 0
          %v429 = vlaneseq
          %v430 = vshrl.u32 %v429, 7
          %v431 = vsub.s32 0, %v430
          %v432 = vrot.slane %v318, %v431
          %v433 = vlaneseq
          %v434 = vshrl.u32 %v433, 7
          %v435 = vsub.s32 1, %v434
          %v436 = vrot.slane %v318, %v435
          %v439 = vsel %vm396, %v432, 0.0
          %v440 = vsel %vm397, %v436, 0.0
          %v441 = vsel %vm398, %v432, 0.0
          %v442 = vsel %vm399, %v436, 0.0
          %v443 = vsel %vm400, %v432, 0.0
          %v444 = vsel %vm401, %v436, 0.0
          %v445 = vsel %vm402, %v432, 0.0
          %v446 = vsel %vm403, %v436, 0.0
          %v447 = vsel %vm404, %v432, 0.0
          %v448 = vsel %vm405, %v436, 0.0
          %v449 = vsel %vm406, %v432, 0.0
          %v450 = vsel %vm407, %v436, 0.0
          %v451 = vsel %vm408, %v432, 0.0
          %v452 = vsel %vm409, %v436, 0.0
          %v453 = vsel %vm410, %v432, 0.0
          %v454 = vsel %vm411, %v436, 0.0
          %v455 = vsel %vm412, %v432, 0.0
          %v456 = vsel %vm413, %v436, 0.0
          %v457 = vsel %vm414, %v432, 0.0
          %v458 = vsel %vm415, %v436, 0.0
          %v459 = vsel %vm416, %v432, 0.0
          %v460 = vsel %vm417, %v436, 0.0
          %v461 = vsel %vm418, %v432, 0.0
          %v462 = vsel %vm419, %v436, 0.0
          %v463 = vsel %vm420, %v432, 0.0
          %v464 = vsel %vm421, %v436, 0.0
          %v465 = vsel %vm422, %v432, 0.0
          %v466 = vsel %vm423, %v436, 0.0
          %v467 = vsel %vm424, %v432, 0.0
          %v468 = vsel %vm425, %v436, 0.0
          %v469 = vsel %vm426, %v432, 0.0
          %v470 = vsel %vm427, %v436, 0.0
          %vm471 = vcmp.eq.s32.totalorder %v364, 1
          %vm472 = vcmp.eq.s32.totalorder %v365, 1
          %vm473 = vcmp.eq.s32.totalorder %v366, 1
          %vm474 = vcmp.eq.s32.totalorder %v367, 1
          %vm475 = vcmp.eq.s32.totalorder %v368, 1
          %vm476 = vcmp.eq.s32.totalorder %v369, 1
          %vm477 = vcmp.eq.s32.totalorder %v370, 1
          %vm478 = vcmp.eq.s32.totalorder %v371, 1
          %vm479 = vcmp.eq.s32.totalorder %v372, 1
          %vm480 = vcmp.eq.s32.totalorder %v373, 1
          %vm481 = vcmp.eq.s32.totalorder %v374, 1
          %vm482 = vcmp.eq.s32.totalorder %v375, 1
          %vm483 = vcmp.eq.s32.totalorder %v376, 1
          %vm484 = vcmp.eq.s32.totalorder %v377, 1
          %vm485 = vcmp.eq.s32.totalorder %v378, 1
          %vm486 = vcmp.eq.s32.totalorder %v379, 1
          %vm487 = vcmp.eq.s32.totalorder %v380, 1
          %vm488 = vcmp.eq.s32.totalorder %v381, 1
          %vm489 = vcmp.eq.s32.totalorder %v382, 1
          %vm490 = vcmp.eq.s32.totalorder %v383, 1
          %vm491 = vcmp.eq.s32.totalorder %v384, 1
          %vm492 = vcmp.eq.s32.totalorder %v385, 1
          %vm493 = vcmp.eq.s32.totalorder %v386, 1
          %vm494 = vcmp.eq.s32.totalorder %v387, 1
          %vm495 = vcmp.eq.s32.totalorder %v388, 1
          %vm496 = vcmp.eq.s32.totalorder %v389, 1
          %vm497 = vcmp.eq.s32.totalorder %v390, 1
          %vm498 = vcmp.eq.s32.totalorder %v391, 1
          %vm499 = vcmp.eq.s32.totalorder %v392, 1
          %vm500 = vcmp.eq.s32.totalorder %v393, 1
          %vm501 = vcmp.eq.s32.totalorder %v394, 1
          %vm502 = vcmp.eq.s32.totalorder %v395, 1
          %v504 = vlaneseq
          %v505 = vshrl.u32 %v504, 7
          %v506 = vsub.s32 0, %v505
          %v507 = vrot.slane %v325, %v506
          %v508 = vlaneseq
          %v509 = vshrl.u32 %v508, 7
          %v510 = vsub.s32 1, %v509
          %v511 = vrot.slane %v325, %v510
          %v514 = vsel %vm471, %v507, 0.0
          %v515 = vsel %vm472, %v511, 0.0
          %v516 = vsel %vm473, %v507, 0.0
          %v517 = vsel %vm474, %v511, 0.0
          %v518 = vsel %vm475, %v507, 0.0
          %v519 = vsel %vm476, %v511, 0.0
          %v520 = vsel %vm477, %v507, 0.0
          %v521 = vsel %vm478, %v511, 0.0
          %v522 = vsel %vm479, %v507, 0.0
          %v523 = vsel %vm480, %v511, 0.0
          %v524 = vsel %vm481, %v507, 0.0
          %v525 = vsel %vm482, %v511, 0.0
          %v526 = vsel %vm483, %v507, 0.0
          %v527 = vsel %vm484, %v511, 0.0
          %v528 = vsel %vm485, %v507, 0.0
          %v529 = vsel %vm486, %v511, 0.0
          %v530 = vsel %vm487, %v507, 0.0
          %v531 = vsel %vm488, %v511, 0.0
          %v532 = vsel %vm489, %v507, 0.0
          %v533 = vsel %vm490, %v511, 0.0
          %v534 = vsel %vm491, %v507, 0.0
          %v535 = vsel %vm492, %v511, 0.0
          %v536 = vsel %vm493, %v507, 0.0
          %v537 = vsel %vm494, %v511, 0.0
          %v538 = vsel %vm495, %v507, 0.0
          %v539 = vsel %vm496, %v511, 0.0
          %v540 = vsel %vm497, %v507, 0.0
          %v541 = vsel %vm498, %v511, 0.0
          %v542 = vsel %vm499, %v507, 0.0
          %v543 = vsel %vm500, %v511, 0.0
          %v544 = vsel %vm501, %v507, 0.0
          %v545 = vsel %vm502, %v511, 0.0
          %v546 = vadd.f32 %v439, %v514
          %v547 = vadd.f32 %v440, %v515
          %v548 = vadd.f32 %v441, %v516
          %v549 = vadd.f32 %v442, %v517
          %v550 = vadd.f32 %v443, %v518
          %v551 = vadd.f32 %v444, %v519
          %v552 = vadd.f32 %v445, %v520
          %v553 = vadd.f32 %v446, %v521
          %v554 = vadd.f32 %v447, %v522
          %v555 = vadd.f32 %v448, %v523
          %v556 = vadd.f32 %v449, %v524
          %v557 = vadd.f32 %v450, %v525
          %v558 = vadd.f32 %v451, %v526
          %v559 = vadd.f32 %v452, %v527
          %v560 = vadd.f32 %v453, %v528
          %v561 = vadd.f32 %v454, %v529
          %v562 = vadd.f32 %v455, %v530
          %v563 = vadd.f32 %v456, %v531
          %v564 = vadd.f32 %v457, %v532
          %v565 = vadd.f32 %v458, %v533
          %v566 = vadd.f32 %v459, %v534
          %v567 = vadd.f32 %v460, %v535
          %v568 = vadd.f32 %v461, %v536
          %v569 = vadd.f32 %v462, %v537
          %v570 = vadd.f32 %v463, %v538
          %v571 = vadd.f32 %v464, %v539
          %v572 = vadd.f32 %v465, %v540
          %v573 = vadd.f32 %v466, %v541
          %v574 = vadd.f32 %v467, %v542
          %v575 = vadd.f32 %v468, %v543
          %v576 = vadd.f32 %v469, %v544
          %v577 = vadd.f32 %v470, %v545
          %v578 = vlaneseq
          %v579 = vshrl.u32 %v578, 7
          %v580 = vsub.s32 0, %v579
          %v581 = vrot.slane %v310, %v580
          %v582 = vlaneseq
          %v583 = vshrl.u32 %v582, 7
          %v584 = vsub.s32 1, %v583
          %v585 = vrot.slane %v310, %v584
          %v586 = vsub.s32 %v340, %v581
          %v587 = vsub.s32 %v340, %v585
          %v588 = vsub.s32 %v341, %v581
          %v589 = vsub.s32 %v341, %v585
          %vm590 = vcmp.eq.s32.totalorder %v586, 0
          %vm591 = vcmp.eq.s32.totalorder %v587, 0
          %vm592 = vcmp.eq.s32.totalorder %v588, 0
          %vm593 = vcmp.eq.s32.totalorder %v589, 0
          %v595 = vlaneseq
          %v596 = vshrl.u32 %v595, 7
          %v597 = vsub.s32 0, %v596
          %v598 = vrot.slane %v332, %v597
          %v599 = vlaneseq
          %v600 = vshrl.u32 %v599, 7
          %v601 = vsub.s32 1, %v600
          %v602 = vrot.slane %v332, %v601
          %v605 = vsel %vm590, %v598, 0.0
          %v606 = vsel %vm591, %v602, 0.0
          %v607 = vsel %vm592, %v598, 0.0
          %v608 = vsel %vm593, %v602, 0.0
          %vm609 = vcmp.eq.s32.totalorder %v586, 1
          %vm610 = vcmp.eq.s32.totalorder %v587, 1
          %vm611 = vcmp.eq.s32.totalorder %v588, 1
          %vm612 = vcmp.eq.s32.totalorder %v589, 1
          %v614 = vlaneseq
          %v615 = vshrl.u32 %v614, 7
          %v616 = vsub.s32 0, %v615
          %v617 = vrot.slane %v338, %v616
          %v618 = vlaneseq
          %v619 = vshrl.u32 %v618, 7
          %v620 = vsub.s32 1, %v619
          %v621 = vrot.slane %v338, %v620
          %v624 = vsel %vm609, %v617, 0.0
          %v625 = vsel %vm610, %v621, 0.0
          %v626 = vsel %vm611, %v617, 0.0
          %v627 = vsel %vm612, %v621, 0.0
          %v628 = vadd.f32 %v605, %v624
          %v629 = vadd.f32 %v606, %v625
          %v630 = vadd.f32 %v607, %v626
          %v631 = vadd.f32 %v608, %v627
          %v632 = vld [vmem:[%s222] sm:$0xff]
          %v633 = vld [vmem:[%s222 + $0x8] sm:$0xff]
          %v634 = vld [vmem:[%s222 + $0x10] sm:$0xff]
          %v635 = vld [vmem:[%s222 + $0x18] sm:$0xff]
          %v636 = vld [vmem:[%s222 + $0x20] sm:$0xff]
          %v637 = vld [vmem:[%s222 + $0x28] sm:$0xff]
          %v638 = vld [vmem:[%s222 + $0x30] sm:$0xff]
          %v639 = vld [vmem:[%s222 + $0x38] sm:$0xff]
          %v640 = vld [vmem:[%s222 + $0x40] sm:$0xff]
          %v641 = vld [vmem:[%s222 + $0x48] sm:$0xff]
          %v642 = vld [vmem:[%s222 + $0x50] sm:$0xff]
          %v643 = vld [vmem:[%s222 + $0x58] sm:$0xff]
          %v644 = vld [vmem:[%s222 + $0x60] sm:$0xff]
          %v645 = vld [vmem:[%s222 + $0x68] sm:$0xff]
          %v646 = vld [vmem:[%s222 + $0x70] sm:$0xff]
          %v647 = vld [vmem:[%s222 + $0x78] sm:$0xff]
          %v648 = vand.u32 %v577, 4294901760
          %649 = vmatprep.subr.mxu0 %v648
          %v650 = vand.u32 %v576, 4294901760
          %651 = vmatpush1.msra.mxu0 %v650
          %v652 = vand.u32 %v575, 4294901760
          %653 = vmatprep.subr.mxu0 %v652
          %v654 = vand.u32 %v574, 4294901760
          %655 = vmatpush1.msra.mxu0 %v654
          %v656 = vand.u32 %v573, 4294901760
          %657 = vmatprep.subr.mxu0 %v656
          %v658 = vand.u32 %v572, 4294901760
          %659 = vmatpush1.msra.mxu0 %v658
          %v660 = vand.u32 %v571, 4294901760
          %661 = vmatprep.subr.mxu0 %v660
          %v662 = vand.u32 %v570, 4294901760
          %663 = vmatpush1.msra.mxu0 %v662
          %v664 = vand.u32 %v569, 4294901760
          %665 = vmatprep.subr.mxu0 %v664
          %v666 = vand.u32 %v568, 4294901760
          %667 = vmatpush1.msra.mxu0 %v666
          %v668 = vand.u32 %v567, 4294901760
          %669 = vmatprep.subr.mxu0 %v668
          %v670 = vand.u32 %v566, 4294901760
          %671 = vmatpush1.msra.mxu0 %v670
          %v672 = vand.u32 %v565, 4294901760
          %673 = vmatprep.subr.mxu0 %v672
          %v674 = vand.u32 %v564, 4294901760
          %675 = vmatpush1.msra.mxu0 %v674
          %v676 = vand.u32 %v563, 4294901760
          %677 = vmatprep.subr.mxu0 %v676
          %v678 = vand.u32 %v562, 4294901760
          %679 = vmatpush1.msra.mxu0 %v678
          %v680 = vand.u32 %v561, 4294901760
          %681 = vmatprep.subr.mxu0 %v680
          %v682 = vand.u32 %v560, 4294901760
          %683 = vmatpush1.msra.mxu0 %v682
          %v684 = vand.u32 %v559, 4294901760
          %685 = vmatprep.subr.mxu0 %v684
          %v686 = vand.u32 %v558, 4294901760
          %687 = vmatpush1.msra.mxu0 %v686
          %v688 = vand.u32 %v557, 4294901760
          %689 = vmatprep.subr.mxu0 %v688
          %v690 = vand.u32 %v556, 4294901760
          %691 = vmatpush1.msra.mxu0 %v690
          %v692 = vand.u32 %v555, 4294901760
          %693 = vmatprep.subr.mxu0 %v692
          %v694 = vand.u32 %v554, 4294901760
          %695 = vmatpush1.msra.mxu0 %v694
          %v696 = vand.u32 %v553, 4294901760
          %697 = vmatprep.subr.mxu0 %v696
          %v698 = vand.u32 %v552, 4294901760
          %699 = vmatpush1.msra.mxu0 %v698
          %v700 = vand.u32 %v551, 4294901760
          %701 = vmatprep.subr.mxu0 %v700
          %v702 = vand.u32 %v550, 4294901760
          %703 = vmatpush1.msra.mxu0 %v702
          %v704 = vand.u32 %v549, 4294901760
          %705 = vmatprep.subr.mxu0 %v704
          %v706 = vand.u32 %v548, 4294901760
          %707 = vmatpush1.msra.mxu0 %v706
          %v708 = vand.u32 %v547, 4294901760
          %709 = vmatprep.subr.mxu0 %v708
          %v710 = vand.u32 %v546, 4294901760
          %711 = vmatpush1.msra.mxu0 %v710
          %712 = vmatprep.subr.mxu0 0.0
          %713 = vmatpush2.msra.mxu0 0.0
          %714 = vmatprep.subr.mxu0 0.0
          %715 = vmatpush2.msra.mxu0 0.0
          %716 = vmatprep.subr.mxu0 0.0
          %717 = vmatpush2.msra.mxu0 0.0
          %718 = vmatprep.subr.mxu0 0.0
          %719 = vmatpush2.msra.mxu0 0.0
          %720 = vmatprep.subr.mxu0 0.0
          %721 = vmatpush2.msra.mxu0 0.0
          %722 = vmatprep.subr.mxu0 0.0
          %723 = vmatpush2.msra.mxu0 0.0
          %724 = vmatprep.subr.mxu0 0.0
          %725 = vmatpush2.msra.mxu0 0.0
          %726 = vmatprep.subr.mxu0 0.0
          %727 = vmatpush2.msra.mxu0 0.0
          %728 = vmatprep.subr.mxu0 0.0
          %729 = vmatpush2.msra.mxu0 0.0
          %730 = vmatprep.subr.mxu0 0.0
          %731 = vmatpush2.msra.mxu0 0.0
          %732 = vmatprep.subr.mxu0 0.0
          %733 = vmatpush2.msra.mxu0 0.0
          %734 = vmatprep.subr.mxu0 0.0
          %735 = vmatpush2.msra.mxu0 0.0
          %736 = vmatprep.subr.mxu0 0.0
          %737 = vmatpush2.msra.mxu0 0.0
          %738 = vmatprep.subr.mxu0 0.0
          %739 = vmatpush2.msra.mxu0 0.0
          %740 = vmatprep.subr.mxu0 0.0
          %741 = vmatpush2.msra.mxu0 0.0
          %742 = vmatprep.subr.mxu0 0.0
          %743 = vmatpush2.msra.mxu0 0.0
          %744 = vmatprep.mubr.f32.mxu0 0.0
          %v745 = vand.u32 %v632, 4294901760
          %v746 = vsub.f32 %v632, %v745
          %v747 = vand.u32 %v746, 4294901760
          %v748 = vsub.f32 %v746, %v747
          %v749 = vand.u32 %v748, 4294901760
          %750 = vmatmul.mubr.f32.gmra.mxu0 %v749
          %v751 = vpop.f32.mrf.mxu0
          %v752 = vadd.f32 0.0, %v751
          %v753 = vpop.f32.mrf.mxu0
          %v754 = vadd.f32 0.0, %v753
          %755 = vmatprep.mubr.f32.mxu0 0.0
          %v756 = vand.u32 %v633, 4294901760
          %v757 = vsub.f32 %v633, %v756
          %v758 = vand.u32 %v757, 4294901760
          %v759 = vsub.f32 %v757, %v758
          %v760 = vand.u32 %v759, 4294901760
          %761 = vmatmul.mubr.f32.gmra.mxu0 %v760
          %v762 = vpop.f32.mrf.mxu0
          %v763 = vadd.f32 0.0, %v762
          %v764 = vpop.f32.mrf.mxu0
          %v765 = vadd.f32 0.0, %v764
          %766 = vmatprep.mubr.f32.mxu0 0.0
          %v767 = vand.u32 %v634, 4294901760
          %v768 = vsub.f32 %v634, %v767
          %v769 = vand.u32 %v768, 4294901760
          %v770 = vsub.f32 %v768, %v769
          %v771 = vand.u32 %v770, 4294901760
          %772 = vmatmul.mubr.f32.gmra.mxu0 %v771
          %v773 = vpop.f32.mrf.mxu0
          %v774 = vadd.f32 0.0, %v773
          %v775 = vpop.f32.mrf.mxu0
          %v776 = vadd.f32 0.0, %v775
          %777 = vmatprep.mubr.f32.mxu0 0.0
          %v778 = vand.u32 %v635, 4294901760
          %v779 = vsub.f32 %v635, %v778
          %v780 = vand.u32 %v779, 4294901760
          %v781 = vsub.f32 %v779, %v780
          %v782 = vand.u32 %v781, 4294901760
          %783 = vmatmul.mubr.f32.gmra.mxu0 %v782
          %v784 = vpop.f32.mrf.mxu0
          %v785 = vadd.f32 0.0, %v784
          %v786 = vpop.f32.mrf.mxu0
          %v787 = vadd.f32 0.0, %v786
          %788 = vmatprep.mubr.f32.mxu0 0.0
          %v789 = vand.u32 %v636, 4294901760
          %v790 = vsub.f32 %v636, %v789
          %v791 = vand.u32 %v790, 4294901760
          %v792 = vsub.f32 %v790, %v791
          %v793 = vand.u32 %v792, 4294901760
          %794 = vmatmul.mubr.f32.gmra.mxu0 %v793
          %v795 = vpop.f32.mrf.mxu0
          %v796 = vadd.f32 0.0, %v795
          %v797 = vpop.f32.mrf.mxu0
          %v798 = vadd.f32 0.0, %v797
          %799 = vmatprep.mubr.f32.mxu0 0.0
          %v800 = vand.u32 %v637, 4294901760
          %v801 = vsub.f32 %v637, %v800
          %v802 = vand.u32 %v801, 4294901760
          %v803 = vsub.f32 %v801, %v802
          %v804 = vand.u32 %v803, 4294901760
          %805 = vmatmul.mubr.f32.gmra.mxu0 %v804
          %v806 = vpop.f32.mrf.mxu0
          %v807 = vadd.f32 0.0, %v806
          %v808 = vpop.f32.mrf.mxu0
          %v809 = vadd.f32 0.0, %v808
          %810 = vmatprep.mubr.f32.mxu0 0.0
          %v811 = vand.u32 %v638, 4294901760
          %v812 = vsub.f32 %v638, %v811
          %v813 = vand.u32 %v812, 4294901760
          %v814 = vsub.f32 %v812, %v813
          %v815 = vand.u32 %v814, 4294901760
          %816 = vmatmul.mubr.f32.gmra.mxu0 %v815
          %v817 = vpop.f32.mrf.mxu0
          %v818 = vadd.f32 0.0, %v817
          %v819 = vpop.f32.mrf.mxu0
          %v820 = vadd.f32 0.0, %v819
          %821 = vmatprep.mubr.f32.mxu0 0.0
          %v822 = vand.u32 %v639, 4294901760
          %v823 = vsub.f32 %v639, %v822
          %v824 = vand.u32 %v823, 4294901760
          %v825 = vsub.f32 %v823, %v824
          %v826 = vand.u32 %v825, 4294901760
          %827 = vmatmul.mubr.f32.gmra.mxu0 %v826
          %v828 = vpop.f32.mrf.mxu0
          %v829 = vadd.f32 0.0, %v828
          %v830 = vpop.f32.mrf.mxu0
          %v831 = vadd.f32 0.0, %v830
          %832 = vmatprep.mubr.f32.mxu0 0.0
          %v833 = vand.u32 %v640, 4294901760
          %v834 = vsub.f32 %v640, %v833
          %v835 = vand.u32 %v834, 4294901760
          %v836 = vsub.f32 %v834, %v835
          %v837 = vand.u32 %v836, 4294901760
          %838 = vmatmul.mubr.f32.gmra.mxu0 %v837
          %v839 = vpop.f32.mrf.mxu0
          %v840 = vadd.f32 0.0, %v839
          %v841 = vpop.f32.mrf.mxu0
          %v842 = vadd.f32 0.0, %v841
          %843 = vmatprep.mubr.f32.mxu0 0.0
          %v844 = vand.u32 %v641, 4294901760
          %v845 = vsub.f32 %v641, %v844
          %v846 = vand.u32 %v845, 4294901760
          %v847 = vsub.f32 %v845, %v846
          %v848 = vand.u32 %v847, 4294901760
          %849 = vmatmul.mubr.f32.gmra.mxu0 %v848
          %v850 = vpop.f32.mrf.mxu0
          %v851 = vadd.f32 0.0, %v850
          %v852 = vpop.f32.mrf.mxu0
          %v853 = vadd.f32 0.0, %v852
          %854 = vmatprep.mubr.f32.mxu0 0.0
          %v855 = vand.u32 %v642, 4294901760
          %v856 = vsub.f32 %v642, %v855
          %v857 = vand.u32 %v856, 4294901760
          %v858 = vsub.f32 %v856, %v857
          %v859 = vand.u32 %v858, 4294901760
          %860 = vmatmul.mubr.f32.gmra.mxu0 %v859
          %v861 = vpop.f32.mrf.mxu0
          %v862 = vadd.f32 0.0, %v861
          %v863 = vpop.f32.mrf.mxu0
          %v864 = vadd.f32 0.0, %v863
          %865 = vmatprep.mubr.f32.mxu0 0.0
          %v866 = vand.u32 %v643, 4294901760
          %v867 = vsub.f32 %v643, %v866
          %v868 = vand.u32 %v867, 4294901760
          %v869 = vsub.f32 %v867, %v868
          %v870 = vand.u32 %v869, 4294901760
          %871 = vmatmul.mubr.f32.gmra.mxu0 %v870
          %v872 = vpop.f32.mrf.mxu0
          %v873 = vadd.f32 0.0, %v872
          %v874 = vpop.f32.mrf.mxu0
          %v875 = vadd.f32 0.0, %v874
          %876 = vmatprep.mubr.f32.mxu0 0.0
          %v877 = vand.u32 %v644, 4294901760
          %v878 = vsub.f32 %v644, %v877
          %v879 = vand.u32 %v878, 4294901760
          %v880 = vsub.f32 %v878, %v879
          %v881 = vand.u32 %v880, 4294901760
          %882 = vmatmul.mubr.f32.gmra.mxu0 %v881
          %v883 = vpop.f32.mrf.mxu0
          %v884 = vadd.f32 0.0, %v883
          %v885 = vpop.f32.mrf.mxu0
          %v886 = vadd.f32 0.0, %v885
          %887 = vmatprep.mubr.f32.mxu0 0.0
          %v888 = vand.u32 %v645, 4294901760
          %v889 = vsub.f32 %v645, %v888
          %v890 = vand.u32 %v889, 4294901760
          %v891 = vsub.f32 %v889, %v890
          %v892 = vand.u32 %v891, 4294901760
          %893 = vmatmul.mubr.f32.gmra.mxu0 %v892
          %v894 = vpop.f32.mrf.mxu0
          %v895 = vadd.f32 0.0, %v894
          %v896 = vpop.f32.mrf.mxu0
          %v897 = vadd.f32 0.0, %v896
          %898 = vmatprep.mubr.f32.mxu0 0.0
          %v899 = vand.u32 %v646, 4294901760
          %v900 = vsub.f32 %v646, %v899
          %v901 = vand.u32 %v900, 4294901760
          %v902 = vsub.f32 %v900, %v901
          %v903 = vand.u32 %v902, 4294901760
          %904 = vmatmul.mubr.f32.gmra.mxu0 %v903
          %v905 = vpop.f32.mrf.mxu0
          %v906 = vadd.f32 0.0, %v905
          %v907 = vpop.f32.mrf.mxu0
          %v908 = vadd.f32 0.0, %v907
          %909 = vmatprep.mubr.f32.mxu0 0.0
          %v910 = vand.u32 %v647, 4294901760
          %v911 = vsub.f32 %v647, %v910
          %v912 = vand.u32 %v911, 4294901760
          %v913 = vsub.f32 %v911, %v912
          %v914 = vand.u32 %v913, 4294901760
          %915 = vmatmul.mubr.f32.gmra.mxu0 %v914
          %v916 = vpop.f32.mrf.mxu0
          %v917 = vadd.f32 0.0, %v916
          %v918 = vpop.f32.mrf.mxu0
          %v919 = vadd.f32 0.0, %v918
          %920 = vdwg.mxu0
          %v921 = vand.u32 %v577, 4294901760
          %v922 = vsub.f32 %v577, %v921
          %v923 = vand.u32 %v922, 4294901760
          %v924 = vsub.f32 %v922, %v923
          %v925 = vand.u32 %v924, 4294901760
          %926 = vmatprep.subr.mxu0 %v925
          %v927 = vand.u32 %v576, 4294901760
          %v928 = vsub.f32 %v576, %v927
          %v929 = vand.u32 %v928, 4294901760
          %v930 = vsub.f32 %v928, %v929
          %v931 = vand.u32 %v930, 4294901760
          %932 = vmatpush1.msra.mxu0 %v931
          %v933 = vand.u32 %v575, 4294901760
          %v934 = vsub.f32 %v575, %v933
          %v935 = vand.u32 %v934, 4294901760
          %v936 = vsub.f32 %v934, %v935
          %v937 = vand.u32 %v936, 4294901760
          %938 = vmatprep.subr.mxu0 %v937
          %v939 = vand.u32 %v574, 4294901760
          %v940 = vsub.f32 %v574, %v939
          %v941 = vand.u32 %v940, 4294901760
          %v942 = vsub.f32 %v940, %v941
          %v943 = vand.u32 %v942, 4294901760
          %944 = vmatpush1.msra.mxu0 %v943
          %v945 = vand.u32 %v573, 4294901760
          %v946 = vsub.f32 %v573, %v945
          %v947 = vand.u32 %v946, 4294901760
          %v948 = vsub.f32 %v946, %v947
          %v949 = vand.u32 %v948, 4294901760
          %950 = vmatprep.subr.mxu0 %v949
          %v951 = vand.u32 %v572, 4294901760
          %v952 = vsub.f32 %v572, %v951
          %v953 = vand.u32 %v952, 4294901760
          %v954 = vsub.f32 %v952, %v953
          %v955 = vand.u32 %v954, 4294901760
          %956 = vmatpush1.msra.mxu0 %v955
          %v957 = vand.u32 %v571, 4294901760
          %v958 = vsub.f32 %v571, %v957
          %v959 = vand.u32 %v958, 4294901760
          %v960 = vsub.f32 %v958, %v959
          %v961 = vand.u32 %v960, 4294901760
          %962 = vmatprep.subr.mxu0 %v961
          %v963 = vand.u32 %v570, 4294901760
          %v964 = vsub.f32 %v570, %v963
          %v965 = vand.u32 %v964, 4294901760
          %v966 = vsub.f32 %v964, %v965
          %v967 = vand.u32 %v966, 4294901760
          %968 = vmatpush1.msra.mxu0 %v967
          %v969 = vand.u32 %v569, 4294901760
          %v970 = vsub.f32 %v569, %v969
          %v971 = vand.u32 %v970, 4294901760
          %v972 = vsub.f32 %v970, %v971
          %v973 = vand.u32 %v972, 4294901760
          %974 = vmatprep.subr.mxu0 %v973
          %v975 = vand.u32 %v568, 4294901760
          %v976 = vsub.f32 %v568, %v975
          %v977 = vand.u32 %v976, 4294901760
          %v978 = vsub.f32 %v976, %v977
          %v979 = vand.u32 %v978, 4294901760
          %980 = vmatpush1.msra.mxu0 %v979
          %v981 = vand.u32 %v567, 4294901760
          %v982 = vsub.f32 %v567, %v981
          %v983 = vand.u32 %v982, 4294901760
          %v984 = vsub.f32 %v982, %v983
          %v985 = vand.u32 %v984, 4294901760
          %986 = vmatprep.subr.mxu0 %v985
          %v987 = vand.u32 %v566, 4294901760
          %v988 = vsub.f32 %v566, %v987
          %v989 = vand.u32 %v988, 4294901760
          %v990 = vsub.f32 %v988, %v989
          %v991 = vand.u32 %v990, 4294901760
          %992 = vmatpush1.msra.mxu0 %v991
          %v993 = vand.u32 %v565, 4294901760
          %v994 = vsub.f32 %v565, %v993
          %v995 = vand.u32 %v994, 4294901760
          %v996 = vsub.f32 %v994, %v995
          %v997 = vand.u32 %v996, 4294901760
          %998 = vmatprep.subr.mxu0 %v997
          %v999 = vand.u32 %v564, 4294901760
          %v1000 = vsub.f32 %v564, %v999
          %v1001 = vand.u32 %v1000, 4294901760
          %v1002 = vsub.f32 %v1000, %v1001
          %v1003 = vand.u32 %v1002, 4294901760
          %1004 = vmatpush1.msra.mxu0 %v1003
          %v1005 = vand.u32 %v563, 4294901760
          %v1006 = vsub.f32 %v563, %v1005
          %v1007 = vand.u32 %v1006, 4294901760
          %v1008 = vsub.f32 %v1006, %v1007
          %v1009 = vand.u32 %v1008, 4294901760
          %1010 = vmatprep.subr.mxu0 %v1009
          %v1011 = vand.u32 %v562, 4294901760
          %v1012 = vsub.f32 %v562, %v1011
          %v1013 = vand.u32 %v1012, 4294901760
          %v1014 = vsub.f32 %v1012, %v1013
          %v1015 = vand.u32 %v1014, 4294901760
          %1016 = vmatpush1.msra.mxu0 %v1015
          %v1017 = vand.u32 %v561, 4294901760
          %v1018 = vsub.f32 %v561, %v1017
          %v1019 = vand.u32 %v1018, 4294901760
          %v1020 = vsub.f32 %v1018, %v1019
          %v1021 = vand.u32 %v1020, 4294901760
          %1022 = vmatprep.subr.mxu0 %v1021
          %v1023 = vand.u32 %v560, 4294901760
          %v1024 = vsub.f32 %v560, %v1023
          %v1025 = vand.u32 %v1024, 4294901760
          %v1026 = vsub.f32 %v1024, %v1025
          %v1027 = vand.u32 %v1026, 4294901760
          %1028 = vmatpush1.msra.mxu0 %v1027
          %v1029 = vand.u32 %v559, 4294901760
          %v1030 = vsub.f32 %v559, %v1029
          %v1031 = vand.u32 %v1030, 4294901760
          %v1032 = vsub.f32 %v1030, %v1031
          %v1033 = vand.u32 %v1032, 4294901760
          %1034 = vmatprep.subr.mxu0 %v1033
          %v1035 = vand.u32 %v558, 4294901760
          %v1036 = vsub.f32 %v558, %v1035
          %v1037 = vand.u32 %v1036, 4294901760
          %v1038 = vsub.f32 %v1036, %v1037
          %v1039 = vand.u32 %v1038, 4294901760
          %1040 = vmatpush1.msra.mxu0 %v1039
          %v1041 = vand.u32 %v557, 4294901760
          %v1042 = vsub.f32 %v557, %v1041
          %v1043 = vand.u32 %v1042, 4294901760
          %v1044 = vsub.f32 %v1042, %v1043
          %v1045 = vand.u32 %v1044, 4294901760
          %1046 = vmatprep.subr.mxu0 %v1045
          %v1047 = vand.u32 %v556, 4294901760
          %v1048 = vsub.f32 %v556, %v1047
          %v1049 = vand.u32 %v1048, 4294901760
          %v1050 = vsub.f32 %v1048, %v1049
          %v1051 = vand.u32 %v1050, 4294901760
          %1052 = vmatpush1.msra.mxu0 %v1051
          %v1053 = vand.u32 %v555, 4294901760
          %v1054 = vsub.f32 %v555, %v1053
          %v1055 = vand.u32 %v1054, 4294901760
          %v1056 = vsub.f32 %v1054, %v1055
          %v1057 = vand.u32 %v1056, 4294901760
          %1058 = vmatprep.subr.mxu0 %v1057
          %v1059 = vand.u32 %v554, 4294901760
          %v1060 = vsub.f32 %v554, %v1059
          %v1061 = vand.u32 %v1060, 4294901760
          %v1062 = vsub.f32 %v1060, %v1061
          %v1063 = vand.u32 %v1062, 4294901760
          %1064 = vmatpush1.msra.mxu0 %v1063
          %v1065 = vand.u32 %v553, 4294901760
          %v1066 = vsub.f32 %v553, %v1065
          %v1067 = vand.u32 %v1066, 4294901760
          %v1068 = vsub.f32 %v1066, %v1067
          %v1069 = vand.u32 %v1068, 4294901760
          %1070 = vmatprep.subr.mxu0 %v1069
          %v1071 = vand.u32 %v552, 4294901760
          %v1072 = vsub.f32 %v552, %v1071
          %v1073 = vand.u32 %v1072, 4294901760
          %v1074 = vsub.f32 %v1072, %v1073
          %v1075 = vand.u32 %v1074, 4294901760
          %1076 = vmatpush1.msra.mxu0 %v1075
          %v1077 = vand.u32 %v551, 4294901760
          %v1078 = vsub.f32 %v551, %v1077
          %v1079 = vand.u32 %v1078, 4294901760
          %v1080 = vsub.f32 %v1078, %v1079
          %v1081 = vand.u32 %v1080, 4294901760
          %1082 = vmatprep.subr.mxu0 %v1081
          %v1083 = vand.u32 %v550, 4294901760
          %v1084 = vsub.f32 %v550, %v1083
          %v1085 = vand.u32 %v1084, 4294901760
          %v1086 = vsub.f32 %v1084, %v1085
          %v1087 = vand.u32 %v1086, 4294901760
          %1088 = vmatpush1.msra.mxu0 %v1087
          %v1089 = vand.u32 %v549, 4294901760
          %v1090 = vsub.f32 %v549, %v1089
          %v1091 = vand.u32 %v1090, 4294901760
          %v1092 = vsub.f32 %v1090, %v1091
          %v1093 = vand.u32 %v1092, 4294901760
          %1094 = vmatprep.subr.mxu0 %v1093
          %v1095 = vand.u32 %v548, 4294901760
          %v1096 = vsub.f32 %v548, %v1095
          %v1097 = vand.u32 %v1096, 4294901760
          %v1098 = vsub.f32 %v1096, %v1097
          %v1099 = vand.u32 %v1098, 4294901760
          %1100 = vmatpush1.msra.mxu0 %v1099
          %v1101 = vand.u32 %v547, 4294901760
          %v1102 = vsub.f32 %v547, %v1101
          %v1103 = vand.u32 %v1102, 4294901760
          %v1104 = vsub.f32 %v1102, %v1103
          %v1105 = vand.u32 %v1104, 4294901760
          %1106 = vmatprep.subr.mxu0 %v1105
          %v1107 = vand.u32 %v546, 4294901760
          %v1108 = vsub.f32 %v546, %v1107
          %v1109 = vand.u32 %v1108, 4294901760
          %v1110 = vsub.f32 %v1108, %v1109
          %v1111 = vand.u32 %v1110, 4294901760
          %1112 = vmatpush1.msra.mxu0 %v1111
          %1113 = vmatprep.subr.mxu0 0.0
          %1114 = vmatpush2.msra.mxu0 0.0
          %1115 = vmatprep.subr.mxu0 0.0
          %1116 = vmatpush2.msra.mxu0 0.0
          %1117 = vmatprep.subr.mxu0 0.0
          %1118 = vmatpush2.msra.mxu0 0.0
          %1119 = vmatprep.subr.mxu0 0.0
          %1120 = vmatpush2.msra.mxu0 0.0
          %1121 = vmatprep.subr.mxu0 0.0
          %1122 = vmatpush2.msra.mxu0 0.0
          %1123 = vmatprep.subr.mxu0 0.0
          %1124 = vmatpush2.msra.mxu0 0.0
          %1125 = vmatprep.subr.mxu0 0.0
          %1126 = vmatpush2.msra.mxu0 0.0
          %1127 = vmatprep.subr.mxu0 0.0
          %1128 = vmatpush2.msra.mxu0 0.0
          %1129 = vmatprep.subr.mxu0 0.0
          %1130 = vmatpush2.msra.mxu0 0.0
          %1131 = vmatprep.subr.mxu0 0.0
          %1132 = vmatpush2.msra.mxu0 0.0
          %1133 = vmatprep.subr.mxu0 0.0
          %1134 = vmatpush2.msra.mxu0 0.0
          %1135 = vmatprep.subr.mxu0 0.0
          %1136 = vmatpush2.msra.mxu0 0.0
          %1137 = vmatprep.subr.mxu0 0.0
          %1138 = vmatpush2.msra.mxu0 0.0
          %1139 = vmatprep.subr.mxu0 0.0
          %1140 = vmatpush2.msra.mxu0 0.0
          %1141 = vmatprep.subr.mxu0 0.0
          %1142 = vmatpush2.msra.mxu0 0.0
          %1143 = vmatprep.subr.mxu0 0.0
          %1144 = vmatpush2.msra.mxu0 0.0
          %1145 = vmatprep.mubr.f32.mxu0 0.0
          %v1146 = vand.u32 %v632, 4294901760
          %1147 = vmatmul.mubr.f32.gmra.mxu0 %v1146
          %v1148 = vpop.f32.mrf.mxu0
          %v1149 = vadd.f32 %v752, %v1148
          %v1150 = vpop.f32.mrf.mxu0
          %v1151 = vadd.f32 %v754, %v1150
          %1152 = vmatprep.mubr.f32.mxu0 0.0
          %v1153 = vand.u32 %v633, 4294901760
          %1154 = vmatmul.mubr.f32.gmra.mxu0 %v1153
          %v1155 = vpop.f32.mrf.mxu0
          %v1156 = vadd.f32 %v763, %v1155
          %v1157 = vpop.f32.mrf.mxu0
          %v1158 = vadd.f32 %v765, %v1157
          %1159 = vmatprep.mubr.f32.mxu0 0.0
          %v1160 = vand.u32 %v634, 4294901760
          %1161 = vmatmul.mubr.f32.gmra.mxu0 %v1160
          %v1162 = vpop.f32.mrf.mxu0
          %v1163 = vadd.f32 %v774, %v1162
          %v1164 = vpop.f32.mrf.mxu0
          %v1165 = vadd.f32 %v776, %v1164
          %1166 = vmatprep.mubr.f32.mxu0 0.0
          %v1167 = vand.u32 %v635, 4294901760
          %1168 = vmatmul.mubr.f32.gmra.mxu0 %v1167
          %v1169 = vpop.f32.mrf.mxu0
          %v1170 = vadd.f32 %v785, %v1169
          %v1171 = vpop.f32.mrf.mxu0
          %v1172 = vadd.f32 %v787, %v1171
          %1173 = vmatprep.mubr.f32.mxu0 0.0
          %v1174 = vand.u32 %v636, 4294901760
          %1175 = vmatmul.mubr.f32.gmra.mxu0 %v1174
          %v1176 = vpop.f32.mrf.mxu0
          %v1177 = vadd.f32 %v796, %v1176
          %v1178 = vpop.f32.mrf.mxu0
          %v1179 = vadd.f32 %v798, %v1178
          %1180 = vmatprep.mubr.f32.mxu0 0.0
          %v1181 = vand.u32 %v637, 4294901760
          %1182 = vmatmul.mubr.f32.gmra.mxu0 %v1181
          %v1183 = vpop.f32.mrf.mxu0
          %v1184 = vadd.f32 %v807, %v1183
          %v1185 = vpop.f32.mrf.mxu0
          %v1186 = vadd.f32 %v809, %v1185
          %1187 = vmatprep.mubr.f32.mxu0 0.0
          %v1188 = vand.u32 %v638, 4294901760
          %1189 = vmatmul.mubr.f32.gmra.mxu0 %v1188
          %v1190 = vpop.f32.mrf.mxu0
          %v1191 = vadd.f32 %v818, %v1190
          %v1192 = vpop.f32.mrf.mxu0
          %v1193 = vadd.f32 %v820, %v1192
          %1194 = vmatprep.mubr.f32.mxu0 0.0
          %v1195 = vand.u32 %v639, 4294901760
          %1196 = vmatmul.mubr.f32.gmra.mxu0 %v1195
          %v1197 = vpop.f32.mrf.mxu0
          %v1198 = vadd.f32 %v829, %v1197
          %v1199 = vpop.f32.mrf.mxu0
          %v1200 = vadd.f32 %v831, %v1199
          %1201 = vmatprep.mubr.f32.mxu0 0.0
          %v1202 = vand.u32 %v640, 4294901760
          %1203 = vmatmul.mubr.f32.gmra.mxu0 %v1202
          %v1204 = vpop.f32.mrf.mxu0
          %v1205 = vadd.f32 %v840, %v1204
          %v1206 = vpop.f32.mrf.mxu0
          %v1207 = vadd.f32 %v842, %v1206
          %1208 = vmatprep.mubr.f32.mxu0 0.0
          %v1209 = vand.u32 %v641, 4294901760
          %1210 = vmatmul.mubr.f32.gmra.mxu0 %v1209
          %v1211 = vpop.f32.mrf.mxu0
          %v1212 = vadd.f32 %v851, %v1211
          %v1213 = vpop.f32.mrf.mxu0
          %v1214 = vadd.f32 %v853, %v1213
          %1215 = vmatprep.mubr.f32.mxu0 0.0
          %v1216 = vand.u32 %v642, 4294901760
          %1217 = vmatmul.mubr.f32.gmra.mxu0 %v1216
          %v1218 = vpop.f32.mrf.mxu0
          %v1219 = vadd.f32 %v862, %v1218
          %v1220 = vpop.f32.mrf.mxu0
          %v1221 = vadd.f32 %v864, %v1220
          %1222 = vmatprep.mubr.f32.mxu0 0.0
          %v1223 = vand.u32 %v643, 4294901760
          %1224 = vmatmul.mubr.f32.gmra.mxu0 %v1223
          %v1225 = vpop.f32.mrf.mxu0
          %v1226 = vadd.f32 %v873, %v1225
          %v1227 = vpop.f32.mrf.mxu0
          %v1228 = vadd.f32 %v875, %v1227
          %1229 = vmatprep.mubr.f32.mxu0 0.0
          %v1230 = vand.u32 %v644, 4294901760
          %1231 = vmatmul.mubr.f32.gmra.mxu0 %v1230
          %v1232 = vpop.f32.mrf.mxu0
          %v1233 = vadd.f32 %v884, %v1232
          %v1234 = vpop.f32.mrf.mxu0
          %v1235 = vadd.f32 %v886, %v1234
          %1236 = vmatprep.mubr.f32.mxu0 0.0
          %v1237 = vand.u32 %v645, 4294901760
          %1238 = vmatmul.mubr.f32.gmra.mxu0 %v1237
          %v1239 = vpop.f32.mrf.mxu0
          %v1240 = vadd.f32 %v895, %v1239
          %v1241 = vpop.f32.mrf.mxu0
          %v1242 = vadd.f32 %v897, %v1241
          %1243 = vmatprep.mubr.f32.mxu0 0.0
          %v1244 = vand.u32 %v646, 4294901760
          %1245 = vmatmul.mubr.f32.gmra.mxu0 %v1244
          %v1246 = vpop.f32.mrf.mxu0
          %v1247 = vadd.f32 %v906, %v1246
          %v1248 = vpop.f32.mrf.mxu0
          %v1249 = vadd.f32 %v908, %v1248
          %1250 = vmatprep.mubr.f32.mxu0 0.0
          %v1251 = vand.u32 %v647, 4294901760
          %1252 = vmatmul.mubr.f32.gmra.mxu0 %v1251
          %v1253 = vpop.f32.mrf.mxu0
          %v1254 = vadd.f32 %v917, %v1253
          %v1255 = vpop.f32.mrf.mxu0
          %v1256 = vadd.f32 %v919, %v1255
          %1257 = vdwg.mxu0
          %v1258 = vand.u32 %v577, 4294901760
          %v1259 = vsub.f32 %v577, %v1258
          %1260 = vmatprep.subr.mxu0 %v1259
          %v1261 = vand.u32 %v576, 4294901760
          %v1262 = vsub.f32 %v576, %v1261
          %1263 = vmatpush1.msra.mxu0 %v1262
          %v1264 = vand.u32 %v575, 4294901760
          %v1265 = vsub.f32 %v575, %v1264
          %1266 = vmatprep.subr.mxu0 %v1265
          %v1267 = vand.u32 %v574, 4294901760
          %v1268 = vsub.f32 %v574, %v1267
          %1269 = vmatpush1.msra.mxu0 %v1268
          %v1270 = vand.u32 %v573, 4294901760
          %v1271 = vsub.f32 %v573, %v1270
          %1272 = vmatprep.subr.mxu0 %v1271
          %v1273 = vand.u32 %v572, 4294901760
          %v1274 = vsub.f32 %v572, %v1273
          %1275 = vmatpush1.msra.mxu0 %v1274
          %v1276 = vand.u32 %v571, 4294901760
          %v1277 = vsub.f32 %v571, %v1276
          %1278 = vmatprep.subr.mxu0 %v1277
          %v1279 = vand.u32 %v570, 4294901760
          %v1280 = vsub.f32 %v570, %v1279
          %1281 = vmatpush1.msra.mxu0 %v1280
          %v1282 = vand.u32 %v569, 4294901760
          %v1283 = vsub.f32 %v569, %v1282
          %1284 = vmatprep.subr.mxu0 %v1283
          %v1285 = vand.u32 %v568, 4294901760
          %v1286 = vsub.f32 %v568, %v1285
          %1287 = vmatpush1.msra.mxu0 %v1286
          %v1288 = vand.u32 %v567, 4294901760
          %v1289 = vsub.f32 %v567, %v1288
          %1290 = vmatprep.subr.mxu0 %v1289
          %v1291 = vand.u32 %v566, 4294901760
          %v1292 = vsub.f32 %v566, %v1291
          %1293 = vmatpush1.msra.mxu0 %v1292
          %v1294 = vand.u32 %v565, 4294901760
          %v1295 = vsub.f32 %v565, %v1294
          %1296 = vmatprep.subr.mxu0 %v1295
          %v1297 = vand.u32 %v564, 4294901760
          %v1298 = vsub.f32 %v564, %v1297
          %1299 = vmatpush1.msra.mxu0 %v1298
          %v1300 = vand.u32 %v563, 4294901760
          %v1301 = vsub.f32 %v563, %v1300
          %1302 = vmatprep.subr.mxu0 %v1301
          %v1303 = vand.u32 %v562, 4294901760
          %v1304 = vsub.f32 %v562, %v1303
          %1305 = vmatpush1.msra.mxu0 %v1304
          %v1306 = vand.u32 %v561, 4294901760
          %v1307 = vsub.f32 %v561, %v1306
          %1308 = vmatprep.subr.mxu0 %v1307
          %v1309 = vand.u32 %v560, 4294901760
          %v1310 = vsub.f32 %v560, %v1309
          %1311 = vmatpush1.msra.mxu0 %v1310
          %v1312 = vand.u32 %v559, 4294901760
          %v1313 = vsub.f32 %v559, %v1312
          %1314 = vmatprep.subr.mxu0 %v1313
          %v1315 = vand.u32 %v558, 4294901760
          %v1316 = vsub.f32 %v558, %v1315
          %1317 = vmatpush1.msra.mxu0 %v1316
          %v1318 = vand.u32 %v557, 4294901760
          %v1319 = vsub.f32 %v557, %v1318
          %1320 = vmatprep.subr.mxu0 %v1319
          %v1321 = vand.u32 %v556, 4294901760
          %v1322 = vsub.f32 %v556, %v1321
          %1323 = vmatpush1.msra.mxu0 %v1322
          %v1324 = vand.u32 %v555, 4294901760
          %v1325 = vsub.f32 %v555, %v1324
          %1326 = vmatprep.subr.mxu0 %v1325
          %v1327 = vand.u32 %v554, 4294901760
          %v1328 = vsub.f32 %v554, %v1327
          %1329 = vmatpush1.msra.mxu0 %v1328
          %v1330 = vand.u32 %v553, 4294901760
          %v1331 = vsub.f32 %v553, %v1330
          %1332 = vmatprep.subr.mxu0 %v1331
          %v1333 = vand.u32 %v552, 4294901760
          %v1334 = vsub.f32 %v552, %v1333
          %1335 = vmatpush1.msra.mxu0 %v1334
          %v1336 = vand.u32 %v551, 4294901760
          %v1337 = vsub.f32 %v551, %v1336
          %1338 = vmatprep.subr.mxu0 %v1337
          %v1339 = vand.u32 %v550, 4294901760
          %v1340 = vsub.f32 %v550, %v1339
          %1341 = vmatpush1.msra.mxu0 %v1340
          %v1342 = vand.u32 %v549, 4294901760
          %v1343 = vsub.f32 %v549, %v1342
          %1344 = vmatprep.subr.mxu0 %v1343
          %v1345 = vand.u32 %v548, 4294901760
          %v1346 = vsub.f32 %v548, %v1345
          %1347 = vmatpush1.msra.mxu0 %v1346
          %v1348 = vand.u32 %v547, 4294901760
          %v1349 = vsub.f32 %v547, %v1348
          %1350 = vmatprep.subr.mxu0 %v1349
          %v1351 = vand.u32 %v546, 4294901760
          %v1352 = vsub.f32 %v546, %v1351
          %1353 = vmatpush1.msra.mxu0 %v1352
          %1354 = vmatprep.subr.mxu0 0.0
          %1355 = vmatpush2.msra.mxu0 0.0
          %1356 = vmatprep.subr.mxu0 0.0
          %1357 = vmatpush2.msra.mxu0 0.0
          %1358 = vmatprep.subr.mxu0 0.0
          %1359 = vmatpush2.msra.mxu0 0.0
          %1360 = vmatprep.subr.mxu0 0.0
          %1361 = vmatpush2.msra.mxu0 0.0
          %1362 = vmatprep.subr.mxu0 0.0
          %1363 = vmatpush2.msra.mxu0 0.0
          %1364 = vmatprep.subr.mxu0 0.0
          %1365 = vmatpush2.msra.mxu0 0.0
          %1366 = vmatprep.subr.mxu0 0.0
          %1367 = vmatpush2.msra.mxu0 0.0
          %1368 = vmatprep.subr.mxu0 0.0
          %1369 = vmatpush2.msra.mxu0 0.0
          %1370 = vmatprep.subr.mxu0 0.0
          %1371 = vmatpush2.msra.mxu0 0.0
          %1372 = vmatprep.subr.mxu0 0.0
          %1373 = vmatpush2.msra.mxu0 0.0
          %1374 = vmatprep.subr.mxu0 0.0
          %1375 = vmatpush2.msra.mxu0 0.0
          %1376 = vmatprep.subr.mxu0 0.0
          %1377 = vmatpush2.msra.mxu0 0.0
          %1378 = vmatprep.subr.mxu0 0.0
          %1379 = vmatpush2.msra.mxu0 0.0
          %1380 = vmatprep.subr.mxu0 0.0
          %1381 = vmatpush2.msra.mxu0 0.0
          %1382 = vmatprep.subr.mxu0 0.0
          %1383 = vmatpush2.msra.mxu0 0.0
          %1384 = vmatprep.subr.mxu0 0.0
          %1385 = vmatpush2.msra.mxu0 0.0
          %1386 = vmatprep.mubr.f32.mxu0 0.0
          %v1387 = vand.u32 %v632, 4294901760
          %v1388 = vsub.f32 %v632, %v1387
          %1389 = vmatmul.mubr.f32.gmra.mxu0 %v1388
          %v1390 = vpop.f32.mrf.mxu0
          %v1391 = vadd.f32 %v1149, %v1390
          %v1392 = vpop.f32.mrf.mxu0
          %v1393 = vadd.f32 %v1151, %v1392
          %1394 = vmatprep.mubr.f32.mxu0 0.0
          %v1395 = vand.u32 %v633, 4294901760
          %v1396 = vsub.f32 %v633, %v1395
          %1397 = vmatmul.mubr.f32.gmra.mxu0 %v1396
          %v1398 = vpop.f32.mrf.mxu0
          %v1399 = vadd.f32 %v1156, %v1398
          %v1400 = vpop.f32.mrf.mxu0
          %v1401 = vadd.f32 %v1158, %v1400
          %1402 = vmatprep.mubr.f32.mxu0 0.0
          %v1403 = vand.u32 %v634, 4294901760
          %v1404 = vsub.f32 %v634, %v1403
          %1405 = vmatmul.mubr.f32.gmra.mxu0 %v1404
          %v1406 = vpop.f32.mrf.mxu0
          %v1407 = vadd.f32 %v1163, %v1406
          %v1408 = vpop.f32.mrf.mxu0
          %v1409 = vadd.f32 %v1165, %v1408
          %1410 = vmatprep.mubr.f32.mxu0 0.0
          %v1411 = vand.u32 %v635, 4294901760
          %v1412 = vsub.f32 %v635, %v1411
          %1413 = vmatmul.mubr.f32.gmra.mxu0 %v1412
          %v1414 = vpop.f32.mrf.mxu0
          %v1415 = vadd.f32 %v1170, %v1414
          %v1416 = vpop.f32.mrf.mxu0
          %v1417 = vadd.f32 %v1172, %v1416
          %1418 = vmatprep.mubr.f32.mxu0 0.0
          %v1419 = vand.u32 %v636, 4294901760
          %v1420 = vsub.f32 %v636, %v1419
          %1421 = vmatmul.mubr.f32.gmra.mxu0 %v1420
          %v1422 = vpop.f32.mrf.mxu0
          %v1423 = vadd.f32 %v1177, %v1422
          %v1424 = vpop.f32.mrf.mxu0
          %v1425 = vadd.f32 %v1179, %v1424
          %1426 = vmatprep.mubr.f32.mxu0 0.0
          %v1427 = vand.u32 %v637, 4294901760
          %v1428 = vsub.f32 %v637, %v1427
          %1429 = vmatmul.mubr.f32.gmra.mxu0 %v1428
          %v1430 = vpop.f32.mrf.mxu0
          %v1431 = vadd.f32 %v1184, %v1430
          %v1432 = vpop.f32.mrf.mxu0
          %v1433 = vadd.f32 %v1186, %v1432
          %1434 = vmatprep.mubr.f32.mxu0 0.0
          %v1435 = vand.u32 %v638, 4294901760
          %v1436 = vsub.f32 %v638, %v1435
          %1437 = vmatmul.mubr.f32.gmra.mxu0 %v1436
          %v1438 = vpop.f32.mrf.mxu0
          %v1439 = vadd.f32 %v1191, %v1438
          %v1440 = vpop.f32.mrf.mxu0
          %v1441 = vadd.f32 %v1193, %v1440
          %1442 = vmatprep.mubr.f32.mxu0 0.0
          %v1443 = vand.u32 %v639, 4294901760
          %v1444 = vsub.f32 %v639, %v1443
          %1445 = vmatmul.mubr.f32.gmra.mxu0 %v1444
          %v1446 = vpop.f32.mrf.mxu0
          %v1447 = vadd.f32 %v1198, %v1446
          %v1448 = vpop.f32.mrf.mxu0
          %v1449 = vadd.f32 %v1200, %v1448
          %1450 = vmatprep.mubr.f32.mxu0 0.0
          %v1451 = vand.u32 %v640, 4294901760
          %v1452 = vsub.f32 %v640, %v1451
          %1453 = vmatmul.mubr.f32.gmra.mxu0 %v1452
          %v1454 = vpop.f32.mrf.mxu0
          %v1455 = vadd.f32 %v1205, %v1454
          %v1456 = vpop.f32.mrf.mxu0
          %v1457 = vadd.f32 %v1207, %v1456
          %1458 = vmatprep.mubr.f32.mxu0 0.0
          %v1459 = vand.u32 %v641, 4294901760
          %v1460 = vsub.f32 %v641, %v1459
          %1461 = vmatmul.mubr.f32.gmra.mxu0 %v1460
          %v1462 = vpop.f32.mrf.mxu0
          %v1463 = vadd.f32 %v1212, %v1462
          %v1464 = vpop.f32.mrf.mxu0
          %v1465 = vadd.f32 %v1214, %v1464
          %1466 = vmatprep.mubr.f32.mxu0 0.0
          %v1467 = vand.u32 %v642, 4294901760
          %v1468 = vsub.f32 %v642, %v1467
          %1469 = vmatmul.mubr.f32.gmra.mxu0 %v1468
          %v1470 = vpop.f32.mrf.mxu0
          %v1471 = vadd.f32 %v1219, %v1470
          %v1472 = vpop.f32.mrf.mxu0
          %v1473 = vadd.f32 %v1221, %v1472
          %1474 = vmatprep.mubr.f32.mxu0 0.0
          %v1475 = vand.u32 %v643, 4294901760
          %v1476 = vsub.f32 %v643, %v1475
          %1477 = vmatmul.mubr.f32.gmra.mxu0 %v1476
          %v1478 = vpop.f32.mrf.mxu0
          %v1479 = vadd.f32 %v1226, %v1478
          %v1480 = vpop.f32.mrf.mxu0
          %v1481 = vadd.f32 %v1228, %v1480
          %1482 = vmatprep.mubr.f32.mxu0 0.0
          %v1483 = vand.u32 %v644, 4294901760
          %v1484 = vsub.f32 %v644, %v1483
          %1485 = vmatmul.mubr.f32.gmra.mxu0 %v1484
          %v1486 = vpop.f32.mrf.mxu0
          %v1487 = vadd.f32 %v1233, %v1486
          %v1488 = vpop.f32.mrf.mxu0
          %v1489 = vadd.f32 %v1235, %v1488
          %1490 = vmatprep.mubr.f32.mxu0 0.0
          %v1491 = vand.u32 %v645, 4294901760
          %v1492 = vsub.f32 %v645, %v1491
          %1493 = vmatmul.mubr.f32.gmra.mxu0 %v1492
          %v1494 = vpop.f32.mrf.mxu0
          %v1495 = vadd.f32 %v1240, %v1494
          %v1496 = vpop.f32.mrf.mxu0
          %v1497 = vadd.f32 %v1242, %v1496
          %1498 = vmatprep.mubr.f32.mxu0 0.0
          %v1499 = vand.u32 %v646, 4294901760
          %v1500 = vsub.f32 %v646, %v1499
          %1501 = vmatmul.mubr.f32.gmra.mxu0 %v1500
          %v1502 = vpop.f32.mrf.mxu0
          %v1503 = vadd.f32 %v1247, %v1502
          %v1504 = vpop.f32.mrf.mxu0
          %v1505 = vadd.f32 %v1249, %v1504
          %1506 = vmatprep.mubr.f32.mxu0 0.0
          %v1507 = vand.u32 %v647, 4294901760
          %v1508 = vsub.f32 %v647, %v1507
          %1509 = vmatmul.mubr.f32.gmra.mxu0 %v1508
          %v1510 = vpop.f32.mrf.mxu0
          %v1511 = vadd.f32 %v1254, %v1510
          %v1512 = vpop.f32.mrf.mxu0
          %v1513 = vadd.f32 %v1256, %v1512
          %1514 = vdwg.mxu0
          %v1515 = vand.u32 %v577, 4294901760
          %1516 = vmatprep.subr.mxu0 %v1515
          %v1517 = vand.u32 %v576, 4294901760
          %1518 = vmatpush1.msra.mxu0 %v1517
          %v1519 = vand.u32 %v575, 4294901760
          %1520 = vmatprep.subr.mxu0 %v1519
          %v1521 = vand.u32 %v574, 4294901760
          %1522 = vmatpush1.msra.mxu0 %v1521
          %v1523 = vand.u32 %v573, 4294901760
          %1524 = vmatprep.subr.mxu0 %v1523
          %v1525 = vand.u32 %v572, 4294901760
          %1526 = vmatpush1.msra.mxu0 %v1525
          %v1527 = vand.u32 %v571, 4294901760
          %1528 = vmatprep.subr.mxu0 %v1527
          %v1529 = vand.u32 %v570, 4294901760
          %1530 = vmatpush1.msra.mxu0 %v1529
          %v1531 = vand.u32 %v569, 4294901760
          %1532 = vmatprep.subr.mxu0 %v1531
          %v1533 = vand.u32 %v568, 4294901760
          %1534 = vmatpush1.msra.mxu0 %v1533
          %v1535 = vand.u32 %v567, 4294901760
          %1536 = vmatprep.subr.mxu0 %v1535
          %v1537 = vand.u32 %v566, 4294901760
          %1538 = vmatpush1.msra.mxu0 %v1537
          %v1539 = vand.u32 %v565, 4294901760
          %1540 = vmatprep.subr.mxu0 %v1539
          %v1541 = vand.u32 %v564, 4294901760
          %1542 = vmatpush1.msra.mxu0 %v1541
          %v1543 = vand.u32 %v563, 4294901760
          %1544 = vmatprep.subr.mxu0 %v1543
          %v1545 = vand.u32 %v562, 4294901760
          %1546 = vmatpush1.msra.mxu0 %v1545
          %v1547 = vand.u32 %v561, 4294901760
          %1548 = vmatprep.subr.mxu0 %v1547
          %v1549 = vand.u32 %v560, 4294901760
          %1550 = vmatpush1.msra.mxu0 %v1549
          %v1551 = vand.u32 %v559, 4294901760
          %1552 = vmatprep.subr.mxu0 %v1551
          %v1553 = vand.u32 %v558, 4294901760
          %1554 = vmatpush1.msra.mxu0 %v1553
          %v1555 = vand.u32 %v557, 4294901760
          %1556 = vmatprep.subr.mxu0 %v1555
          %v1557 = vand.u32 %v556, 4294901760
          %1558 = vmatpush1.msra.mxu0 %v1557
          %v1559 = vand.u32 %v555, 4294901760
          %1560 = vmatprep.subr.mxu0 %v1559
          %v1561 = vand.u32 %v554, 4294901760
          %1562 = vmatpush1.msra.mxu0 %v1561
          %v1563 = vand.u32 %v553, 4294901760
          %1564 = vmatprep.subr.mxu0 %v1563
          %v1565 = vand.u32 %v552, 4294901760
          %1566 = vmatpush1.msra.mxu0 %v1565
          %v1567 = vand.u32 %v551, 4294901760
          %1568 = vmatprep.subr.mxu0 %v1567
          %v1569 = vand.u32 %v550, 4294901760
          %1570 = vmatpush1.msra.mxu0 %v1569
          %v1571 = vand.u32 %v549, 4294901760
          %1572 = vmatprep.subr.mxu0 %v1571
          %v1573 = vand.u32 %v548, 4294901760
          %1574 = vmatpush1.msra.mxu0 %v1573
          %v1575 = vand.u32 %v547, 4294901760
          %1576 = vmatprep.subr.mxu0 %v1575
          %v1577 = vand.u32 %v546, 4294901760
          %1578 = vmatpush1.msra.mxu0 %v1577
          %1579 = vmatprep.subr.mxu0 0.0
          %1580 = vmatpush2.msra.mxu0 0.0
          %1581 = vmatprep.subr.mxu0 0.0
          %1582 = vmatpush2.msra.mxu0 0.0
          %1583 = vmatprep.subr.mxu0 0.0
          %1584 = vmatpush2.msra.mxu0 0.0
          %1585 = vmatprep.subr.mxu0 0.0
          %1586 = vmatpush2.msra.mxu0 0.0
          %1587 = vmatprep.subr.mxu0 0.0
          %1588 = vmatpush2.msra.mxu0 0.0
          %1589 = vmatprep.subr.mxu0 0.0
          %1590 = vmatpush2.msra.mxu0 0.0
          %1591 = vmatprep.subr.mxu0 0.0
          %1592 = vmatpush2.msra.mxu0 0.0
          %1593 = vmatprep.subr.mxu0 0.0
          %1594 = vmatpush2.msra.mxu0 0.0
          %1595 = vmatprep.subr.mxu0 0.0
          %1596 = vmatpush2.msra.mxu0 0.0
          %1597 = vmatprep.subr.mxu0 0.0
          %1598 = vmatpush2.msra.mxu0 0.0
          %1599 = vmatprep.subr.mxu0 0.0
          %1600 = vmatpush2.msra.mxu0 0.0
          %1601 = vmatprep.subr.mxu0 0.0
          %1602 = vmatpush2.msra.mxu0 0.0
          %1603 = vmatprep.subr.mxu0 0.0
          %1604 = vmatpush2.msra.mxu0 0.0
          %1605 = vmatprep.subr.mxu0 0.0
          %1606 = vmatpush2.msra.mxu0 0.0
          %1607 = vmatprep.subr.mxu0 0.0
          %1608 = vmatpush2.msra.mxu0 0.0
          %1609 = vmatprep.subr.mxu0 0.0
          %1610 = vmatpush2.msra.mxu0 0.0
          %1611 = vmatprep.mubr.f32.mxu0 0.0
          %v1612 = vand.u32 %v632, 4294901760
          %v1613 = vsub.f32 %v632, %v1612
          %v1614 = vand.u32 %v1613, 4294901760
          %1615 = vmatmul.mubr.f32.gmra.mxu0 %v1614
          %v1616 = vpop.f32.mrf.mxu0
          %v1617 = vadd.f32 %v1391, %v1616
          %v1618 = vpop.f32.mrf.mxu0
          %v1619 = vadd.f32 %v1393, %v1618
          %1620 = vmatprep.mubr.f32.mxu0 0.0
          %v1621 = vand.u32 %v633, 4294901760
          %v1622 = vsub.f32 %v633, %v1621
          %v1623 = vand.u32 %v1622, 4294901760
          %1624 = vmatmul.mubr.f32.gmra.mxu0 %v1623
          %v1625 = vpop.f32.mrf.mxu0
          %v1626 = vadd.f32 %v1399, %v1625
          %v1627 = vpop.f32.mrf.mxu0
          %v1628 = vadd.f32 %v1401, %v1627
          %1629 = vmatprep.mubr.f32.mxu0 0.0
          %v1630 = vand.u32 %v634, 4294901760
          %v1631 = vsub.f32 %v634, %v1630
          %v1632 = vand.u32 %v1631, 4294901760
          %1633 = vmatmul.mubr.f32.gmra.mxu0 %v1632
          %v1634 = vpop.f32.mrf.mxu0
          %v1635 = vadd.f32 %v1407, %v1634
          %v1636 = vpop.f32.mrf.mxu0
          %v1637 = vadd.f32 %v1409, %v1636
          %1638 = vmatprep.mubr.f32.mxu0 0.0
          %v1639 = vand.u32 %v635, 4294901760
          %v1640 = vsub.f32 %v635, %v1639
          %v1641 = vand.u32 %v1640, 4294901760
          %1642 = vmatmul.mubr.f32.gmra.mxu0 %v1641
          %v1643 = vpop.f32.mrf.mxu0
          %v1644 = vadd.f32 %v1415, %v1643
          %v1645 = vpop.f32.mrf.mxu0
          %v1646 = vadd.f32 %v1417, %v1645
          %1647 = vmatprep.mubr.f32.mxu0 0.0
          %v1648 = vand.u32 %v636, 4294901760
          %v1649 = vsub.f32 %v636, %v1648
          %v1650 = vand.u32 %v1649, 4294901760
          %1651 = vmatmul.mubr.f32.gmra.mxu0 %v1650
          %v1652 = vpop.f32.mrf.mxu0
          %v1653 = vadd.f32 %v1423, %v1652
          %v1654 = vpop.f32.mrf.mxu0
          %v1655 = vadd.f32 %v1425, %v1654
          %1656 = vmatprep.mubr.f32.mxu0 0.0
          %v1657 = vand.u32 %v637, 4294901760
          %v1658 = vsub.f32 %v637, %v1657
          %v1659 = vand.u32 %v1658, 4294901760
          %1660 = vmatmul.mubr.f32.gmra.mxu0 %v1659
          %v1661 = vpop.f32.mrf.mxu0
          %v1662 = vadd.f32 %v1431, %v1661
          %v1663 = vpop.f32.mrf.mxu0
          %v1664 = vadd.f32 %v1433, %v1663
          %1665 = vmatprep.mubr.f32.mxu0 0.0
          %v1666 = vand.u32 %v638, 4294901760
          %v1667 = vsub.f32 %v638, %v1666
          %v1668 = vand.u32 %v1667, 4294901760
          %1669 = vmatmul.mubr.f32.gmra.mxu0 %v1668
          %v1670 = vpop.f32.mrf.mxu0
          %v1671 = vadd.f32 %v1439, %v1670
          %v1672 = vpop.f32.mrf.mxu0
          %v1673 = vadd.f32 %v1441, %v1672
          %1674 = vmatprep.mubr.f32.mxu0 0.0
          %v1675 = vand.u32 %v639, 4294901760
          %v1676 = vsub.f32 %v639, %v1675
          %v1677 = vand.u32 %v1676, 4294901760
          %1678 = vmatmul.mubr.f32.gmra.mxu0 %v1677
          %v1679 = vpop.f32.mrf.mxu0
          %v1680 = vadd.f32 %v1447, %v1679
          %v1681 = vpop.f32.mrf.mxu0
          %v1682 = vadd.f32 %v1449, %v1681
          %1683 = vmatprep.mubr.f32.mxu0 0.0
          %v1684 = vand.u32 %v640, 4294901760
          %v1685 = vsub.f32 %v640, %v1684
          %v1686 = vand.u32 %v1685, 4294901760
          %1687 = vmatmul.mubr.f32.gmra.mxu0 %v1686
          %v1688 = vpop.f32.mrf.mxu0
          %v1689 = vadd.f32 %v1455, %v1688
          %v1690 = vpop.f32.mrf.mxu0
          %v1691 = vadd.f32 %v1457, %v1690
          %1692 = vmatprep.mubr.f32.mxu0 0.0
          %v1693 = vand.u32 %v641, 4294901760
          %v1694 = vsub.f32 %v641, %v1693
          %v1695 = vand.u32 %v1694, 4294901760
          %1696 = vmatmul.mubr.f32.gmra.mxu0 %v1695
          %v1697 = vpop.f32.mrf.mxu0
          %v1698 = vadd.f32 %v1463, %v1697
          %v1699 = vpop.f32.mrf.mxu0
          %v1700 = vadd.f32 %v1465, %v1699
          %1701 = vmatprep.mubr.f32.mxu0 0.0
          %v1702 = vand.u32 %v642, 4294901760
          %v1703 = vsub.f32 %v642, %v1702
          %v1704 = vand.u32 %v1703, 4294901760
          %1705 = vmatmul.mubr.f32.gmra.mxu0 %v1704
          %v1706 = vpop.f32.mrf.mxu0
          %v1707 = vadd.f32 %v1471, %v1706
          %v1708 = vpop.f32.mrf.mxu0
          %v1709 = vadd.f32 %v1473, %v1708
          %1710 = vmatprep.mubr.f32.mxu0 0.0
          %v1711 = vand.u32 %v643, 4294901760
          %v1712 = vsub.f32 %v643, %v1711
          %v1713 = vand.u32 %v1712, 4294901760
          %1714 = vmatmul.mubr.f32.gmra.mxu0 %v1713
          %v1715 = vpop.f32.mrf.mxu0
          %v1716 = vadd.f32 %v1479, %v1715
          %v1717 = vpop.f32.mrf.mxu0
          %v1718 = vadd.f32 %v1481, %v1717
          %1719 = vmatprep.mubr.f32.mxu0 0.0
          %v1720 = vand.u32 %v644, 4294901760
          %v1721 = vsub.f32 %v644, %v1720
          %v1722 = vand.u32 %v1721, 4294901760
          %1723 = vmatmul.mubr.f32.gmra.mxu0 %v1722
          %v1724 = vpop.f32.mrf.mxu0
          %v1725 = vadd.f32 %v1487, %v1724
          %v1726 = vpop.f32.mrf.mxu0
          %v1727 = vadd.f32 %v1489, %v1726
          %1728 = vmatprep.mubr.f32.mxu0 0.0
          %v1729 = vand.u32 %v645, 4294901760
          %v1730 = vsub.f32 %v645, %v1729
          %v1731 = vand.u32 %v1730, 4294901760
          %1732 = vmatmul.mubr.f32.gmra.mxu0 %v1731
          %v1733 = vpop.f32.mrf.mxu0
          %v1734 = vadd.f32 %v1495, %v1733
          %v1735 = vpop.f32.mrf.mxu0
          %v1736 = vadd.f32 %v1497, %v1735
          %1737 = vmatprep.mubr.f32.mxu0 0.0
          %v1738 = vand.u32 %v646, 4294901760
          %v1739 = vsub.f32 %v646, %v1738
          %v1740 = vand.u32 %v1739, 4294901760
          %1741 = vmatmul.mubr.f32.gmra.mxu0 %v1740
          %v1742 = vpop.f32.mrf.mxu0
          %v1743 = vadd.f32 %v1503, %v1742
          %v1744 = vpop.f32.mrf.mxu0
          %v1745 = vadd.f32 %v1505, %v1744
          %1746 = vmatprep.mubr.f32.mxu0 0.0
          %v1747 = vand.u32 %v647, 4294901760
          %v1748 = vsub.f32 %v647, %v1747
          %v1749 = vand.u32 %v1748, 4294901760
          %1750 = vmatmul.mubr.f32.gmra.mxu0 %v1749
          %v1751 = vpop.f32.mrf.mxu0
          %v1752 = vadd.f32 %v1511, %v1751
          %v1753 = vpop.f32.mrf.mxu0
          %v1754 = vadd.f32 %v1513, %v1753
          %1755 = vdwg.mxu0
          %v1756 = vand.u32 %v577, 4294901760
          %v1757 = vsub.f32 %v577, %v1756
          %v1758 = vand.u32 %v1757, 4294901760
          %1759 = vmatprep.subr.mxu0 %v1758
          %v1760 = vand.u32 %v576, 4294901760
          %v1761 = vsub.f32 %v576, %v1760
          %v1762 = vand.u32 %v1761, 4294901760
          %1763 = vmatpush1.msra.mxu0 %v1762
          %v1764 = vand.u32 %v575, 4294901760
          %v1765 = vsub.f32 %v575, %v1764
          %v1766 = vand.u32 %v1765, 4294901760
          %1767 = vmatprep.subr.mxu0 %v1766
          %v1768 = vand.u32 %v574, 4294901760
          %v1769 = vsub.f32 %v574, %v1768
          %v1770 = vand.u32 %v1769, 4294901760
          %1771 = vmatpush1.msra.mxu0 %v1770
          %v1772 = vand.u32 %v573, 4294901760
          %v1773 = vsub.f32 %v573, %v1772
          %v1774 = vand.u32 %v1773, 4294901760
          %1775 = vmatprep.subr.mxu0 %v1774
          %v1776 = vand.u32 %v572, 4294901760
          %v1777 = vsub.f32 %v572, %v1776
          %v1778 = vand.u32 %v1777, 4294901760
          %1779 = vmatpush1.msra.mxu0 %v1778
          %v1780 = vand.u32 %v571, 4294901760
          %v1781 = vsub.f32 %v571, %v1780
          %v1782 = vand.u32 %v1781, 4294901760
          %1783 = vmatprep.subr.mxu0 %v1782
          %v1784 = vand.u32 %v570, 4294901760
          %v1785 = vsub.f32 %v570, %v1784
          %v1786 = vand.u32 %v1785, 4294901760
          %1787 = vmatpush1.msra.mxu0 %v1786
          %v1788 = vand.u32 %v569, 4294901760
          %v1789 = vsub.f32 %v569, %v1788
          %v1790 = vand.u32 %v1789, 4294901760
          %1791 = vmatprep.subr.mxu0 %v1790
          %v1792 = vand.u32 %v568, 4294901760
          %v1793 = vsub.f32 %v568, %v1792
          %v1794 = vand.u32 %v1793, 4294901760
          %1795 = vmatpush1.msra.mxu0 %v1794
          %v1796 = vand.u32 %v567, 4294901760
          %v1797 = vsub.f32 %v567, %v1796
          %v1798 = vand.u32 %v1797, 4294901760
          %1799 = vmatprep.subr.mxu0 %v1798
          %v1800 = vand.u32 %v566, 4294901760
          %v1801 = vsub.f32 %v566, %v1800
          %v1802 = vand.u32 %v1801, 4294901760
          %1803 = vmatpush1.msra.mxu0 %v1802
          %v1804 = vand.u32 %v565, 4294901760
          %v1805 = vsub.f32 %v565, %v1804
          %v1806 = vand.u32 %v1805, 4294901760
          %1807 = vmatprep.subr.mxu0 %v1806
          %v1808 = vand.u32 %v564, 4294901760
          %v1809 = vsub.f32 %v564, %v1808
          %v1810 = vand.u32 %v1809, 4294901760
          %1811 = vmatpush1.msra.mxu0 %v1810
          %v1812 = vand.u32 %v563, 4294901760
          %v1813 = vsub.f32 %v563, %v1812
          %v1814 = vand.u32 %v1813, 4294901760
          %1815 = vmatprep.subr.mxu0 %v1814
          %v1816 = vand.u32 %v562, 4294901760
          %v1817 = vsub.f32 %v562, %v1816
          %v1818 = vand.u32 %v1817, 4294901760
          %1819 = vmatpush1.msra.mxu0 %v1818
          %v1820 = vand.u32 %v561, 4294901760
          %v1821 = vsub.f32 %v561, %v1820
          %v1822 = vand.u32 %v1821, 4294901760
          %1823 = vmatprep.subr.mxu0 %v1822
          %v1824 = vand.u32 %v560, 4294901760
          %v1825 = vsub.f32 %v560, %v1824
          %v1826 = vand.u32 %v1825, 4294901760
          %1827 = vmatpush1.msra.mxu0 %v1826
          %v1828 = vand.u32 %v559, 4294901760
          %v1829 = vsub.f32 %v559, %v1828
          %v1830 = vand.u32 %v1829, 4294901760
          %1831 = vmatprep.subr.mxu0 %v1830
          %v1832 = vand.u32 %v558, 4294901760
          %v1833 = vsub.f32 %v558, %v1832
          %v1834 = vand.u32 %v1833, 4294901760
          %1835 = vmatpush1.msra.mxu0 %v1834
          %v1836 = vand.u32 %v557, 4294901760
          %v1837 = vsub.f32 %v557, %v1836
          %v1838 = vand.u32 %v1837, 4294901760
          %1839 = vmatprep.subr.mxu0 %v1838
          %v1840 = vand.u32 %v556, 4294901760
          %v1841 = vsub.f32 %v556, %v1840
          %v1842 = vand.u32 %v1841, 4294901760
          %1843 = vmatpush1.msra.mxu0 %v1842
          %v1844 = vand.u32 %v555, 4294901760
          %v1845 = vsub.f32 %v555, %v1844
          %v1846 = vand.u32 %v1845, 4294901760
          %1847 = vmatprep.subr.mxu0 %v1846
          %v1848 = vand.u32 %v554, 4294901760
          %v1849 = vsub.f32 %v554, %v1848
          %v1850 = vand.u32 %v1849, 4294901760
          %1851 = vmatpush1.msra.mxu0 %v1850
          %v1852 = vand.u32 %v553, 4294901760
          %v1853 = vsub.f32 %v553, %v1852
          %v1854 = vand.u32 %v1853, 4294901760
          %1855 = vmatprep.subr.mxu0 %v1854
          %v1856 = vand.u32 %v552, 4294901760
          %v1857 = vsub.f32 %v552, %v1856
          %v1858 = vand.u32 %v1857, 4294901760
          %1859 = vmatpush1.msra.mxu0 %v1858
          %v1860 = vand.u32 %v551, 4294901760
          %v1861 = vsub.f32 %v551, %v1860
          %v1862 = vand.u32 %v1861, 4294901760
          %1863 = vmatprep.subr.mxu0 %v1862
          %v1864 = vand.u32 %v550, 4294901760
          %v1865 = vsub.f32 %v550, %v1864
          %v1866 = vand.u32 %v1865, 4294901760
          %1867 = vmatpush1.msra.mxu0 %v1866
          %v1868 = vand.u32 %v549, 4294901760
          %v1869 = vsub.f32 %v549, %v1868
          %v1870 = vand.u32 %v1869, 4294901760
          %1871 = vmatprep.subr.mxu0 %v1870
          %v1872 = vand.u32 %v548, 4294901760
          %v1873 = vsub.f32 %v548, %v1872
          %v1874 = vand.u32 %v1873, 4294901760
          %1875 = vmatpush1.msra.mxu0 %v1874
          %v1876 = vand.u32 %v547, 4294901760
          %v1877 = vsub.f32 %v547, %v1876
          %v1878 = vand.u32 %v1877, 4294901760
          %1879 = vmatprep.subr.mxu0 %v1878
          %v1880 = vand.u32 %v546, 4294901760
          %v1881 = vsub.f32 %v546, %v1880
          %v1882 = vand.u32 %v1881, 4294901760
          %1883 = vmatpush1.msra.mxu0 %v1882
          %1884 = vmatprep.subr.mxu0 0.0
          %1885 = vmatpush2.msra.mxu0 0.0
          %1886 = vmatprep.subr.mxu0 0.0
          %1887 = vmatpush2.msra.mxu0 0.0
          %1888 = vmatprep.subr.mxu0 0.0
          %1889 = vmatpush2.msra.mxu0 0.0
          %1890 = vmatprep.subr.mxu0 0.0
          %1891 = vmatpush2.msra.mxu0 0.0
          %1892 = vmatprep.subr.mxu0 0.0
          %1893 = vmatpush2.msra.mxu0 0.0
          %1894 = vmatprep.subr.mxu0 0.0
          %1895 = vmatpush2.msra.mxu0 0.0
          %1896 = vmatprep.subr.mxu0 0.0
          %1897 = vmatpush2.msra.mxu0 0.0
          %1898 = vmatprep.subr.mxu0 0.0
          %1899 = vmatpush2.msra.mxu0 0.0
          %1900 = vmatprep.subr.mxu0 0.0
          %1901 = vmatpush2.msra.mxu0 0.0
          %1902 = vmatprep.subr.mxu0 0.0
          %1903 = vmatpush2.msra.mxu0 0.0
          %1904 = vmatprep.subr.mxu0 0.0
          %1905 = vmatpush2.msra.mxu0 0.0
          %1906 = vmatprep.subr.mxu0 0.0
          %1907 = vmatpush2.msra.mxu0 0.0
          %1908 = vmatprep.subr.mxu0 0.0
          %1909 = vmatpush2.msra.mxu0 0.0
          %1910 = vmatprep.subr.mxu0 0.0
          %1911 = vmatpush2.msra.mxu0 0.0
          %1912 = vmatprep.subr.mxu0 0.0
          %1913 = vmatpush2.msra.mxu0 0.0
          %1914 = vmatprep.subr.mxu0 0.0
          %1915 = vmatpush2.msra.mxu0 0.0
          %1916 = vmatprep.mubr.f32.mxu0 0.0
          %v1917 = vand.u32 %v632, 4294901760
          %1918 = vmatmul.mubr.f32.gmra.mxu0 %v1917
          %v1919 = vpop.f32.mrf.mxu0
          %v1920 = vadd.f32 %v1617, %v1919
          %v1921 = vpop.f32.mrf.mxu0
          %v1922 = vadd.f32 %v1619, %v1921
          %1923 = vmatprep.mubr.f32.mxu0 0.0
          %v1924 = vand.u32 %v633, 4294901760
          %1925 = vmatmul.mubr.f32.gmra.mxu0 %v1924
          %v1926 = vpop.f32.mrf.mxu0
          %v1927 = vadd.f32 %v1626, %v1926
          %v1928 = vpop.f32.mrf.mxu0
          %v1929 = vadd.f32 %v1628, %v1928
          %1930 = vmatprep.mubr.f32.mxu0 0.0
          %v1931 = vand.u32 %v634, 4294901760
          %1932 = vmatmul.mubr.f32.gmra.mxu0 %v1931
          %v1933 = vpop.f32.mrf.mxu0
          %v1934 = vadd.f32 %v1635, %v1933
          %v1935 = vpop.f32.mrf.mxu0
          %v1936 = vadd.f32 %v1637, %v1935
          %1937 = vmatprep.mubr.f32.mxu0 0.0
          %v1938 = vand.u32 %v635, 4294901760
          %1939 = vmatmul.mubr.f32.gmra.mxu0 %v1938
          %v1940 = vpop.f32.mrf.mxu0
          %v1941 = vadd.f32 %v1644, %v1940
          %v1942 = vpop.f32.mrf.mxu0
          %v1943 = vadd.f32 %v1646, %v1942
          %1944 = vmatprep.mubr.f32.mxu0 0.0
          %v1945 = vand.u32 %v636, 4294901760
          %1946 = vmatmul.mubr.f32.gmra.mxu0 %v1945
          %v1947 = vpop.f32.mrf.mxu0
          %v1948 = vadd.f32 %v1653, %v1947
          %v1949 = vpop.f32.mrf.mxu0
          %v1950 = vadd.f32 %v1655, %v1949
          %1951 = vmatprep.mubr.f32.mxu0 0.0
          %v1952 = vand.u32 %v637, 4294901760
          %1953 = vmatmul.mubr.f32.gmra.mxu0 %v1952
          %v1954 = vpop.f32.mrf.mxu0
          %v1955 = vadd.f32 %v1662, %v1954
          %v1956 = vpop.f32.mrf.mxu0
          %v1957 = vadd.f32 %v1664, %v1956
          %1958 = vmatprep.mubr.f32.mxu0 0.0
          %v1959 = vand.u32 %v638, 4294901760
          %1960 = vmatmul.mubr.f32.gmra.mxu0 %v1959
          %v1961 = vpop.f32.mrf.mxu0
          %v1962 = vadd.f32 %v1671, %v1961
          %v1963 = vpop.f32.mrf.mxu0
          %v1964 = vadd.f32 %v1673, %v1963
          %1965 = vmatprep.mubr.f32.mxu0 0.0
          %v1966 = vand.u32 %v639, 4294901760
          %1967 = vmatmul.mubr.f32.gmra.mxu0 %v1966
          %v1968 = vpop.f32.mrf.mxu0
          %v1969 = vadd.f32 %v1680, %v1968
          %v1970 = vpop.f32.mrf.mxu0
          %v1971 = vadd.f32 %v1682, %v1970
          %1972 = vmatprep.mubr.f32.mxu0 0.0
          %v1973 = vand.u32 %v640, 4294901760
          %1974 = vmatmul.mubr.f32.gmra.mxu0 %v1973
          %v1975 = vpop.f32.mrf.mxu0
          %v1976 = vadd.f32 %v1689, %v1975
          %v1977 = vpop.f32.mrf.mxu0
          %v1978 = vadd.f32 %v1691, %v1977
          %1979 = vmatprep.mubr.f32.mxu0 0.0
          %v1980 = vand.u32 %v641, 4294901760
          %1981 = vmatmul.mubr.f32.gmra.mxu0 %v1980
          %v1982 = vpop.f32.mrf.mxu0
          %v1983 = vadd.f32 %v1698, %v1982
          %v1984 = vpop.f32.mrf.mxu0
          %v1985 = vadd.f32 %v1700, %v1984
          %1986 = vmatprep.mubr.f32.mxu0 0.0
          %v1987 = vand.u32 %v642, 4294901760
          %1988 = vmatmul.mubr.f32.gmra.mxu0 %v1987
          %v1989 = vpop.f32.mrf.mxu0
          %v1990 = vadd.f32 %v1707, %v1989
          %v1991 = vpop.f32.mrf.mxu0
          %v1992 = vadd.f32 %v1709, %v1991
          %1993 = vmatprep.mubr.f32.mxu0 0.0
          %v1994 = vand.u32 %v643, 4294901760
          %1995 = vmatmul.mubr.f32.gmra.mxu0 %v1994
          %v1996 = vpop.f32.mrf.mxu0
          %v1997 = vadd.f32 %v1716, %v1996
          %v1998 = vpop.f32.mrf.mxu0
          %v1999 = vadd.f32 %v1718, %v1998
          %2000 = vmatprep.mubr.f32.mxu0 0.0
          %v2001 = vand.u32 %v644, 4294901760
          %2002 = vmatmul.mubr.f32.gmra.mxu0 %v2001
          %v2003 = vpop.f32.mrf.mxu0
          %v2004 = vadd.f32 %v1725, %v2003
          %v2005 = vpop.f32.mrf.mxu0
          %v2006 = vadd.f32 %v1727, %v2005
          %2007 = vmatprep.mubr.f32.mxu0 0.0
          %v2008 = vand.u32 %v645, 4294901760
          %2009 = vmatmul.mubr.f32.gmra.mxu0 %v2008
          %v2010 = vpop.f32.mrf.mxu0
          %v2011 = vadd.f32 %v1734, %v2010
          %v2012 = vpop.f32.mrf.mxu0
          %v2013 = vadd.f32 %v1736, %v2012
          %2014 = vmatprep.mubr.f32.mxu0 0.0
          %v2015 = vand.u32 %v646, 4294901760
          %2016 = vmatmul.mubr.f32.gmra.mxu0 %v2015
          %v2017 = vpop.f32.mrf.mxu0
          %v2018 = vadd.f32 %v1743, %v2017
          %v2019 = vpop.f32.mrf.mxu0
          %v2020 = vadd.f32 %v1745, %v2019
          %2021 = vmatprep.mubr.f32.mxu0 0.0
          %v2022 = vand.u32 %v647, 4294901760
          %2023 = vmatmul.mubr.f32.gmra.mxu0 %v2022
          %v2024 = vpop.f32.mrf.mxu0
          %v2025 = vadd.f32 %v1752, %v2024
          %v2026 = vpop.f32.mrf.mxu0
          %v2027 = vadd.f32 %v1754, %v2026
          %2028 = vdwg.mxu0
          %v2029 = vand.u32 %v577, 4294901760
          %2030 = vmatprep.subr.mxu0 %v2029
          %v2031 = vand.u32 %v576, 4294901760
          %2032 = vmatpush1.msra.mxu0 %v2031
          %v2033 = vand.u32 %v575, 4294901760
          %2034 = vmatprep.subr.mxu0 %v2033
          %v2035 = vand.u32 %v574, 4294901760
          %2036 = vmatpush1.msra.mxu0 %v2035
          %v2037 = vand.u32 %v573, 4294901760
          %2038 = vmatprep.subr.mxu0 %v2037
          %v2039 = vand.u32 %v572, 4294901760
          %2040 = vmatpush1.msra.mxu0 %v2039
          %v2041 = vand.u32 %v571, 4294901760
          %2042 = vmatprep.subr.mxu0 %v2041
          %v2043 = vand.u32 %v570, 4294901760
          %2044 = vmatpush1.msra.mxu0 %v2043
          %v2045 = vand.u32 %v569, 4294901760
          %2046 = vmatprep.subr.mxu0 %v2045
          %v2047 = vand.u32 %v568, 4294901760
          %2048 = vmatpush1.msra.mxu0 %v2047
          %v2049 = vand.u32 %v567, 4294901760
          %2050 = vmatprep.subr.mxu0 %v2049
          %v2051 = vand.u32 %v566, 4294901760
          %2052 = vmatpush1.msra.mxu0 %v2051
          %v2053 = vand.u32 %v565, 4294901760
          %2054 = vmatprep.subr.mxu0 %v2053
          %v2055 = vand.u32 %v564, 4294901760
          %2056 = vmatpush1.msra.mxu0 %v2055
          %v2057 = vand.u32 %v563, 4294901760
          %2058 = vmatprep.subr.mxu0 %v2057
          %v2059 = vand.u32 %v562, 4294901760
          %2060 = vmatpush1.msra.mxu0 %v2059
          %v2061 = vand.u32 %v561, 4294901760
          %2062 = vmatprep.subr.mxu0 %v2061
          %v2063 = vand.u32 %v560, 4294901760
          %2064 = vmatpush1.msra.mxu0 %v2063
          %v2065 = vand.u32 %v559, 4294901760
          %2066 = vmatprep.subr.mxu0 %v2065
          %v2067 = vand.u32 %v558, 4294901760
          %2068 = vmatpush1.msra.mxu0 %v2067
          %v2069 = vand.u32 %v557, 4294901760
          %2070 = vmatprep.subr.mxu0 %v2069
          %v2071 = vand.u32 %v556, 4294901760
          %2072 = vmatpush1.msra.mxu0 %v2071
          %v2073 = vand.u32 %v555, 4294901760
          %2074 = vmatprep.subr.mxu0 %v2073
          %v2075 = vand.u32 %v554, 4294901760
          %2076 = vmatpush1.msra.mxu0 %v2075
          %v2077 = vand.u32 %v553, 4294901760
          %2078 = vmatprep.subr.mxu0 %v2077
          %v2079 = vand.u32 %v552, 4294901760
          %2080 = vmatpush1.msra.mxu0 %v2079
          %v2081 = vand.u32 %v551, 4294901760
          %2082 = vmatprep.subr.mxu0 %v2081
          %v2083 = vand.u32 %v550, 4294901760
          %2084 = vmatpush1.msra.mxu0 %v2083
          %v2085 = vand.u32 %v549, 4294901760
          %2086 = vmatprep.subr.mxu0 %v2085
          %v2087 = vand.u32 %v548, 4294901760
          %2088 = vmatpush1.msra.mxu0 %v2087
          %v2089 = vand.u32 %v547, 4294901760
          %2090 = vmatprep.subr.mxu0 %v2089
          %v2091 = vand.u32 %v546, 4294901760
          %2092 = vmatpush1.msra.mxu0 %v2091
          %2093 = vmatprep.subr.mxu0 0.0
          %2094 = vmatpush2.msra.mxu0 0.0
          %2095 = vmatprep.subr.mxu0 0.0
          %2096 = vmatpush2.msra.mxu0 0.0
          %2097 = vmatprep.subr.mxu0 0.0
          %2098 = vmatpush2.msra.mxu0 0.0
          %2099 = vmatprep.subr.mxu0 0.0
          %2100 = vmatpush2.msra.mxu0 0.0
          %2101 = vmatprep.subr.mxu0 0.0
          %2102 = vmatpush2.msra.mxu0 0.0
          %2103 = vmatprep.subr.mxu0 0.0
          %2104 = vmatpush2.msra.mxu0 0.0
          %2105 = vmatprep.subr.mxu0 0.0
          %2106 = vmatpush2.msra.mxu0 0.0
          %2107 = vmatprep.subr.mxu0 0.0
          %2108 = vmatpush2.msra.mxu0 0.0
          %2109 = vmatprep.subr.mxu0 0.0
          %2110 = vmatpush2.msra.mxu0 0.0
          %2111 = vmatprep.subr.mxu0 0.0
          %2112 = vmatpush2.msra.mxu0 0.0
          %2113 = vmatprep.subr.mxu0 0.0
          %2114 = vmatpush2.msra.mxu0 0.0
          %2115 = vmatprep.subr.mxu0 0.0
          %2116 = vmatpush2.msra.mxu0 0.0
          %2117 = vmatprep.subr.mxu0 0.0
          %2118 = vmatpush2.msra.mxu0 0.0
          %2119 = vmatprep.subr.mxu0 0.0
          %2120 = vmatpush2.msra.mxu0 0.0
          %2121 = vmatprep.subr.mxu0 0.0
          %2122 = vmatpush2.msra.mxu0 0.0
          %2123 = vmatprep.subr.mxu0 0.0
          %2124 = vmatpush2.msra.mxu0 0.0
          %2125 = vmatprep.mubr.f32.mxu0 0.0
          %v2126 = vand.u32 %v632, 4294901760
          %2127 = vmatmul.mubr.f32.gmra.mxu0 %v2126
          %v2128 = vpop.f32.mrf.mxu0
          %v2129 = vadd.f32 %v1920, %v2128
          %v2130 = vpop.f32.mrf.mxu0
          %v2131 = vadd.f32 %v1922, %v2130
          %2132 = vmatprep.mubr.f32.mxu0 0.0
          %v2133 = vand.u32 %v633, 4294901760
          %2134 = vmatmul.mubr.f32.gmra.mxu0 %v2133
          %v2135 = vpop.f32.mrf.mxu0
          %v2136 = vadd.f32 %v1927, %v2135
          %v2137 = vpop.f32.mrf.mxu0
          %v2138 = vadd.f32 %v1929, %v2137
          %2139 = vmatprep.mubr.f32.mxu0 0.0
          %v2140 = vand.u32 %v634, 4294901760
          %2141 = vmatmul.mubr.f32.gmra.mxu0 %v2140
          %v2142 = vpop.f32.mrf.mxu0
          %v2143 = vadd.f32 %v1934, %v2142
          %v2144 = vpop.f32.mrf.mxu0
          %v2145 = vadd.f32 %v1936, %v2144
          %2146 = vmatprep.mubr.f32.mxu0 0.0
          %v2147 = vand.u32 %v635, 4294901760
          %2148 = vmatmul.mubr.f32.gmra.mxu0 %v2147
          %v2149 = vpop.f32.mrf.mxu0
          %v2150 = vadd.f32 %v1941, %v2149
          %v2151 = vpop.f32.mrf.mxu0
          %v2152 = vadd.f32 %v1943, %v2151
          %2153 = vmatprep.mubr.f32.mxu0 0.0
          %v2154 = vand.u32 %v636, 4294901760
          %2155 = vmatmul.mubr.f32.gmra.mxu0 %v2154
          %v2156 = vpop.f32.mrf.mxu0
          %v2157 = vadd.f32 %v1948, %v2156
          %v2158 = vpop.f32.mrf.mxu0
          %v2159 = vadd.f32 %v1950, %v2158
          %2160 = vmatprep.mubr.f32.mxu0 0.0
          %v2161 = vand.u32 %v637, 4294901760
          %2162 = vmatmul.mubr.f32.gmra.mxu0 %v2161
          %v2163 = vpop.f32.mrf.mxu0
          %v2164 = vadd.f32 %v1955, %v2163
          %v2165 = vpop.f32.mrf.mxu0
          %v2166 = vadd.f32 %v1957, %v2165
          %2167 = vmatprep.mubr.f32.mxu0 0.0
          %v2168 = vand.u32 %v638, 4294901760
          %2169 = vmatmul.mubr.f32.gmra.mxu0 %v2168
          %v2170 = vpop.f32.mrf.mxu0
          %v2171 = vadd.f32 %v1962, %v2170
          %v2172 = vpop.f32.mrf.mxu0
          %v2173 = vadd.f32 %v1964, %v2172
          %2174 = vmatprep.mubr.f32.mxu0 0.0
          %v2175 = vand.u32 %v639, 4294901760
          %2176 = vmatmul.mubr.f32.gmra.mxu0 %v2175
          %v2177 = vpop.f32.mrf.mxu0
          %v2178 = vadd.f32 %v1969, %v2177
          %v2179 = vpop.f32.mrf.mxu0
          %v2180 = vadd.f32 %v1971, %v2179
          %2181 = vmatprep.mubr.f32.mxu0 0.0
          %v2182 = vand.u32 %v640, 4294901760
          %2183 = vmatmul.mubr.f32.gmra.mxu0 %v2182
          %v2184 = vpop.f32.mrf.mxu0
          %v2185 = vadd.f32 %v1976, %v2184
          %v2186 = vpop.f32.mrf.mxu0
          %v2187 = vadd.f32 %v1978, %v2186
          %2188 = vmatprep.mubr.f32.mxu0 0.0
          %v2189 = vand.u32 %v641, 4294901760
          %2190 = vmatmul.mubr.f32.gmra.mxu0 %v2189
          %v2191 = vpop.f32.mrf.mxu0
          %v2192 = vadd.f32 %v1983, %v2191
          %v2193 = vpop.f32.mrf.mxu0
          %v2194 = vadd.f32 %v1985, %v2193
          %2195 = vmatprep.mubr.f32.mxu0 0.0
          %v2196 = vand.u32 %v642, 4294901760
          %2197 = vmatmul.mubr.f32.gmra.mxu0 %v2196
          %v2198 = vpop.f32.mrf.mxu0
          %v2199 = vadd.f32 %v1990, %v2198
          %v2200 = vpop.f32.mrf.mxu0
          %v2201 = vadd.f32 %v1992, %v2200
          %2202 = vmatprep.mubr.f32.mxu0 0.0
          %v2203 = vand.u32 %v643, 4294901760
          %2204 = vmatmul.mubr.f32.gmra.mxu0 %v2203
          %v2205 = vpop.f32.mrf.mxu0
          %v2206 = vadd.f32 %v1997, %v2205
          %v2207 = vpop.f32.mrf.mxu0
          %v2208 = vadd.f32 %v1999, %v2207
          %2209 = vmatprep.mubr.f32.mxu0 0.0
          %v2210 = vand.u32 %v644, 4294901760
          %2211 = vmatmul.mubr.f32.gmra.mxu0 %v2210
          %v2212 = vpop.f32.mrf.mxu0
          %v2213 = vadd.f32 %v2004, %v2212
          %v2214 = vpop.f32.mrf.mxu0
          %v2215 = vadd.f32 %v2006, %v2214
          %2216 = vmatprep.mubr.f32.mxu0 0.0
          %v2217 = vand.u32 %v645, 4294901760
          %2218 = vmatmul.mubr.f32.gmra.mxu0 %v2217
          %v2219 = vpop.f32.mrf.mxu0
          %v2220 = vadd.f32 %v2011, %v2219
          %v2221 = vpop.f32.mrf.mxu0
          %v2222 = vadd.f32 %v2013, %v2221
          %2223 = vmatprep.mubr.f32.mxu0 0.0
          %v2224 = vand.u32 %v646, 4294901760
          %2225 = vmatmul.mubr.f32.gmra.mxu0 %v2224
          %v2226 = vpop.f32.mrf.mxu0
          %v2227 = vadd.f32 %v2018, %v2226
          %v2228 = vpop.f32.mrf.mxu0
          %v2229 = vadd.f32 %v2020, %v2228
          %2230 = vmatprep.mubr.f32.mxu0 0.0
          %v2231 = vand.u32 %v647, 4294901760
          %2232 = vmatmul.mubr.f32.gmra.mxu0 %v2231
          %v2233 = vpop.f32.mrf.mxu0
          %v2234 = vadd.f32 %v2025, %v2233
          %v2235 = vpop.f32.mrf.mxu0
          %v2236 = vadd.f32 %v2027, %v2235
          %2237 = vdwg.mxu0
          %v2238 = vld [vmem:[%s242] sm:$0xff]
          %v2239 = vld [vmem:[%s242 + $0x8] sm:$0xff]
          %v2240 = vmul.f32 %v2129, %v628
          %v2241 = vmul.f32 %v2131, %v629
          %v2242 = vmul.f32 %v2136, %v630
          %v2243 = vmul.f32 %v2138, %v631
          %v2244 = vmul.f32 %v2143, %v628
          %v2245 = vmul.f32 %v2145, %v629
          %v2246 = vmul.f32 %v2150, %v630
          %v2247 = vmul.f32 %v2152, %v631
          %v2248 = vmul.f32 %v2157, %v628
          %v2249 = vmul.f32 %v2159, %v629
          %v2250 = vmul.f32 %v2164, %v630
          %v2251 = vmul.f32 %v2166, %v631
          %v2252 = vmul.f32 %v2171, %v628
          %v2253 = vmul.f32 %v2173, %v629
          %v2254 = vmul.f32 %v2178, %v630
          %v2255 = vmul.f32 %v2180, %v631
          %v2256 = vmul.f32 %v2185, %v628
          %v2257 = vmul.f32 %v2187, %v629
          %v2258 = vmul.f32 %v2192, %v630
          %v2259 = vmul.f32 %v2194, %v631
          %v2260 = vmul.f32 %v2199, %v628
          %v2261 = vmul.f32 %v2201, %v629
          %v2262 = vmul.f32 %v2206, %v630
          %v2263 = vmul.f32 %v2208, %v631
          %v2264 = vmul.f32 %v2213, %v628
          %v2265 = vmul.f32 %v2215, %v629
          %v2266 = vmul.f32 %v2220, %v630
          %v2267 = vmul.f32 %v2222, %v631
          %v2268 = vmul.f32 %v2227, %v628
          %v2269 = vmul.f32 %v2229, %v629
          %v2270 = vmul.f32 %v2234, %v630
          %v2271 = vmul.f32 %v2236, %v631
          %v2272 = vadd.f32 %v2240, %v2242
          %v2273 = vrot.slane %v2272, 4
          %v2274 = vadd.f32 %v2272, %v2273
          %v2275 = vrot.slane %v2274, 2
          %v2276 = vadd.f32 %v2274, %v2275
          %v2277 = vrot.slane %v2276, 1
          %v2278 = vadd.f32 %v2276, %v2277
          %v2279 = vadd.f32 %v2241, %v2243
          %v2280 = vrot.slane %v2279, 4
          %v2281 = vadd.f32 %v2279, %v2280
          %v2282 = vrot.slane %v2281, 2
          %v2283 = vadd.f32 %v2281, %v2282
          %v2284 = vrot.slane %v2283, 1
          %v2285 = vadd.f32 %v2283, %v2284
          %v2286 = vadd.f32 %v2244, %v2246
          %v2287 = vrot.slane %v2286, 4
          %v2288 = vadd.f32 %v2286, %v2287
          %v2289 = vrot.slane %v2288, 2
          %v2290 = vadd.f32 %v2288, %v2289
          %v2291 = vrot.slane %v2290, 1
          %v2292 = vadd.f32 %v2290, %v2291
          %v2293 = vadd.f32 %v2245, %v2247
          %v2294 = vrot.slane %v2293, 4
          %v2295 = vadd.f32 %v2293, %v2294
          %v2296 = vrot.slane %v2295, 2
          %v2297 = vadd.f32 %v2295, %v2296
          %v2298 = vrot.slane %v2297, 1
          %v2299 = vadd.f32 %v2297, %v2298
          %v2300 = vadd.f32 %v2248, %v2250
          %v2301 = vrot.slane %v2300, 4
          %v2302 = vadd.f32 %v2300, %v2301
          %v2303 = vrot.slane %v2302, 2
          %v2304 = vadd.f32 %v2302, %v2303
          %v2305 = vrot.slane %v2304, 1
          %v2306 = vadd.f32 %v2304, %v2305
          %v2307 = vadd.f32 %v2249, %v2251
          %v2308 = vrot.slane %v2307, 4
          %v2309 = vadd.f32 %v2307, %v2308
          %v2310 = vrot.slane %v2309, 2
          %v2311 = vadd.f32 %v2309, %v2310
          %v2312 = vrot.slane %v2311, 1
          %v2313 = vadd.f32 %v2311, %v2312
          %v2314 = vadd.f32 %v2252, %v2254
          %v2315 = vrot.slane %v2314, 4
          %v2316 = vadd.f32 %v2314, %v2315
          %v2317 = vrot.slane %v2316, 2
          %v2318 = vadd.f32 %v2316, %v2317
          %v2319 = vrot.slane %v2318, 1
          %v2320 = vadd.f32 %v2318, %v2319
          %v2321 = vadd.f32 %v2253, %v2255
          %v2322 = vrot.slane %v2321, 4
          %v2323 = vadd.f32 %v2321, %v2322
          %v2324 = vrot.slane %v2323, 2
          %v2325 = vadd.f32 %v2323, %v2324
          %v2326 = vrot.slane %v2325, 1
          %v2327 = vadd.f32 %v2325, %v2326
          %v2328 = vadd.f32 %v2256, %v2258
          %v2329 = vrot.slane %v2328, 4
          %v2330 = vadd.f32 %v2328, %v2329
          %v2331 = vrot.slane %v2330, 2
          %v2332 = vadd.f32 %v2330, %v2331
          %v2333 = vrot.slane %v2332, 1
          %v2334 = vadd.f32 %v2332, %v2333
          %v2335 = vadd.f32 %v2257, %v2259
          %v2336 = vrot.slane %v2335, 4
          %v2337 = vadd.f32 %v2335, %v2336
          %v2338 = vrot.slane %v2337, 2
          %v2339 = vadd.f32 %v2337, %v2338
          %v2340 = vrot.slane %v2339, 1
          %v2341 = vadd.f32 %v2339, %v2340
          %v2342 = vadd.f32 %v2260, %v2262
          %v2343 = vrot.slane %v2342, 4
          %v2344 = vadd.f32 %v2342, %v2343
          %v2345 = vrot.slane %v2344, 2
          %v2346 = vadd.f32 %v2344, %v2345
          %v2347 = vrot.slane %v2346, 1
          %v2348 = vadd.f32 %v2346, %v2347
          %v2349 = vadd.f32 %v2261, %v2263
          %v2350 = vrot.slane %v2349, 4
          %v2351 = vadd.f32 %v2349, %v2350
          %v2352 = vrot.slane %v2351, 2
          %v2353 = vadd.f32 %v2351, %v2352
          %v2354 = vrot.slane %v2353, 1
          %v2355 = vadd.f32 %v2353, %v2354
          %v2356 = vadd.f32 %v2264, %v2266
          %v2357 = vrot.slane %v2356, 4
          %v2358 = vadd.f32 %v2356, %v2357
          %v2359 = vrot.slane %v2358, 2
          %v2360 = vadd.f32 %v2358, %v2359
          %v2361 = vrot.slane %v2360, 1
          %v2362 = vadd.f32 %v2360, %v2361
          %v2363 = vadd.f32 %v2265, %v2267
          %v2364 = vrot.slane %v2363, 4
          %v2365 = vadd.f32 %v2363, %v2364
          %v2366 = vrot.slane %v2365, 2
          %v2367 = vadd.f32 %v2365, %v2366
          %v2368 = vrot.slane %v2367, 1
          %v2369 = vadd.f32 %v2367, %v2368
          %v2370 = vadd.f32 %v2268, %v2270
          %v2371 = vrot.slane %v2370, 4
          %v2372 = vadd.f32 %v2370, %v2371
          %v2373 = vrot.slane %v2372, 2
          %v2374 = vadd.f32 %v2372, %v2373
          %v2375 = vrot.slane %v2374, 1
          %v2376 = vadd.f32 %v2374, %v2375
          %v2377 = vadd.f32 %v2269, %v2271
          %v2378 = vrot.slane %v2377, 4
          %v2379 = vadd.f32 %v2377, %v2378
          %v2380 = vrot.slane %v2379, 2
          %v2381 = vadd.f32 %v2379, %v2380
          %v2382 = vrot.slane %v2381, 1
          %v2383 = vadd.f32 %v2381, %v2382
          %vm2400 = vcmask 1041409
          %v2401 = vsel %vm2400, %v2292, %v2278
          %vm2402 = vcmask 1042434
          %v2403 = vsel %vm2402, %v2306, %v2401
          %vm2404 = vcmask 1043459
          %v2405 = vsel %vm2404, %v2320, %v2403
          %vm2406 = vcmask 1044484
          %v2407 = vsel %vm2406, %v2334, %v2405
          %vm2408 = vcmask 1045509
          %v2409 = vsel %vm2408, %v2348, %v2407
          %vm2410 = vcmask 1046534
          %v2411 = vsel %vm2410, %v2362, %v2409
          %vm2412 = vcmask 1047559
          %v2413 = vsel %vm2412, %v2376, %v2411
          %v2414 = vsel %vm2400, %v2299, %v2285
          %v2415 = vsel %vm2402, %v2313, %v2414
          %v2416 = vsel %vm2404, %v2327, %v2415
          %v2417 = vsel %vm2406, %v2341, %v2416
          %v2418 = vsel %vm2408, %v2355, %v2417
          %v2419 = vsel %vm2410, %v2369, %v2418
          %v2420 = vsel %vm2412, %v2383, %v2419
          %v2423 = vadd.f32 %v2238, %v2413
          %v2424 = vadd.f32 %v2239, %v2420
          %2425 = vst [vmem:[%s242] sm:$0xff] %v2423
          %2426 = vst [vmem:[%s242 + $0x8] sm:$0xff] %v2424
        $region44: #{tpu_custom_call.1} parent=27 // pred_fallthru
          _
        %p2427 = scmp.eq.s32.totalorder %s42, 3
        // Predicated region
        $region45: #{tpu_custom_call.1} parent=27 // pred_check
          %p2428 = pneg %p2427
        $region46: #{tpu_custom_call.1} parent=27 // pred_check_branch
          %2430 = sbr.rel (%p2428) target = $region48
        $region47: #{tpu_custom_call.1} parent=27 // pred_region
          %p2431 = scmp.gt.s32.totalorder %s253, 1
          %s2432 = scalar_select %p2431, %s253, 1
          %s2433 = scvt.s32.f32 %s2432
          %v2434 = vstv %s2433
          %v2435 = vrcp.pop %v2434
          %s2436 = vtos %v2435
          %v2437 = vld [vmem:[%s242] sm:$0xff]
          %v2438 = vld [vmem:[%s242 + $0x8] sm:$0xff]
          %v2439 = vstv %s2436
          %v2440 = vmul.f32 %v2437, %v2439
          %v2441 = vmul.f32 %v2438, %v2439
          %2442 = vst [vmem:[%s242] sm:$0xff] %v2440
          %2443 = vst [vmem:[%s242 + $0x8] sm:$0xff] %v2441
        $region48: #{tpu_custom_call.1} parent=27 // pred_fallthru
          _
        %s2444 = sand.u32 %s132, 1
        %s2445 = scalar_lea.sflag [#allocation8], %s2444
        %s2446 = sand.u32 %s132, 1
        %s2447 = smul.addr %s2446, 16
        %s2448 = scalar_lea.vmem [#allocation11], %s2447
        // Predicated region
        $region49: #{tpu_custom_call.1} parent=27 // pred_check
          %p2449 = pneg %p142
        $region50: #{tpu_custom_call.1} parent=27 // pred_check_branch
          %2451 = sbr.rel (%p2449) target = $region52
        $region51: #{tpu_custom_call.1} parent=27 // pred_region
          %s2452 = smul.u32 2, %s41
          %s2454 = ssub.s32 256, 256
          %2455 = vsyncadd %s2445, %s2454
          %s2456 = smul.addr %s40, 2
          %s2457 = sadd.s32 %s2452, %s2456
          %s2458 = smul.addr %s2457, 128
          %s2459 = scalar_lea.hbm %s5, %s2458
          %s2461 = sshll.u32 %s2448, 4
          %s2462 = int_to_ptr.vmem [resolvable:$true] %s2461
          %2464 = dma.vmem_to_hbm [thread:$0]  %s2462, 256, %s2459, %s2445
        $region52: #{tpu_custom_call.1} parent=27 // pred_fallthru
          _
      $region28: #{tpu_custom_call.1} parent=5 // pred_fallthru
        _
      %p2465 = scmp.le.s32.totalorder 2, %s30
      // Predicated region
      $region53: #{tpu_custom_call.1} parent=5 // pred_check
        %p2466 = pneg %p2465
      $region54: #{tpu_custom_call.1} parent=5 // pred_check_branch
        %2468 = sbr.rel (%p2466) target = $region56
      $region55: #{tpu_custom_call.1} parent=5 // pred_region
        %s2469 = ssub.s32 %s30, 2
        // Predicated region
        $region57: #{tpu_custom_call.1} parent=55 // pred_check
          %p2470 = pneg %p148
        $region58: #{tpu_custom_call.1} parent=55 // pred_check_branch
          %2472 = sbr.rel (%p2470) target = $region60
        $region59: #{tpu_custom_call.1} parent=55 // pred_region
          %s2473 = sand.u32 %s133, 1
          %s2474 = scalar_lea.sflag [#allocation8], %s2473
          %s2475 = sand.u32 %s133, 1
          %s2476 = smul.addr %s2475, 16
          %s2477 = scalar_lea.vmem [#allocation11], %s2476
          %2478 = dma.done %s2474, 256
        $region60: #{tpu_custom_call.1} parent=55 // pred_fallthru
          _
      $region56: #{tpu_custom_call.1} parent=5 // pred_fallthru
        _
    $region6: #{tpu_custom_call.1} parent=1 // loop_footer
      %s34 = sadd.s32 1, %s30
    $region7: #{tpu_custom_call.1} parent=1 // loop_footer_branch
      %29 = sbr.rel target = $region3
    $region8: #{tpu_custom_call.1} parent=1 // loop_exit
      _
    %2479 = vsyncpa [#allocation7], 1
    %s2480 = scalar_lea.sflag [#allocation7], 1
    %2481 = vsyncpa %s2480, 1
    %2482 = vsyncpa [#allocation10], 1
    %s2483 = scalar_lea.sflag [#allocation10], 1
    %2484 = vsyncpa %s2483, 1
    %2485 = vsyncpa [#allocation8], 1
    %s2486 = scalar_lea.sflag [#allocation8], 1
    %2487 = vsyncpa %s2486, 1

</llo_original>
